<compile_context>
chip_gen: v7x
topology: tpu7x:2x2x1
jax: 0.10.0
libtpu: 0.0.40
codegen_flags: <defaults>
</compile_context>

<pallas_src>
import jax
import jax.numpy as jnp
from jax.experimental import pallas as pl
from jax.experimental.pallas import tpu as pltpu

LANE = 128            # TPU lane width: pad hidden / embedding dims to this
ROW_TILE = 16         # batch-row granularity (bf16 sublane packing = 16 rows)
MAX_TILE_N = 512      # batch rows per grid step (per quadruplet member)
COMPUTE_DTYPE = jnp.bfloat16   # MXU operand + activation streaming dtype


def _round_up(x, m):
    return (x + m - 1) // m * m


def _cdiv(a, b):
    return -(-a // b)


# ------------------------------ kernels ----------------------------------- #
def _mlp(x, w1, b1, w2, b2):
    """relu(x @ w1 + b1) @ w2 + b2 ; bf16 MXU operands, f32 accumulate/epilogue."""
    h = jnp.dot(x, w1, preferred_element_type=jnp.float32) + b1
    h = jnp.maximum(h, 0.0)                                   # f32 VPU epilogue
    out = jnp.dot(h.astype(w2.dtype), w2, preferred_element_type=jnp.float32)
    return out + b2


def _quadruplet_kernel(x1_ref, x2_ref, x3_ref, x4_ref,
                       w1_ref, b1_ref, w2_ref, b2_ref,
                       o1_ref, o2_ref, o3_ref, o4_ref):
    # Shared weights stay in VMEM (constant index_map); apply the MLP per
    # member directly from its input tile to its output tile -- no concat or
    # slice copies in VMEM.
    w1 = w1_ref[...]
    b1 = b1_ref[...]
    w2 = w2_ref[...]
    b2 = b2_ref[...]
    for x_ref, o_ref in ((x1_ref, o1_ref), (x2_ref, o2_ref),
                         (x3_ref, o3_ref), (x4_ref, o4_ref)):
        o_ref[...] = _mlp(x_ref[...], w1, b1, w2, b2).astype(o_ref.dtype)


def _single_kernel(x_ref, w1_ref, b1_ref, w2_ref, b2_ref, o_ref):
    o_ref[...] = _mlp(x_ref[...], w1_ref[...], b1_ref[...], w2_ref[...],
                      b2_ref[...]).astype(o_ref.dtype)


# --------------------------- params / padding ------------------------------ #
def make_embedding_params(key, d_in, d_hidden, d_emb):
    """Deterministic logical (unpadded, f32) weights for the embedding MLP."""
    k1, k2, k3, k4 = jax.random.split(key, 4)
    w1 = jax.random.normal(k1, (d_in, d_hidden), jnp.float32) / jnp.sqrt(d_in)
    b1 = jax.random.normal(k2, (d_hidden,), jnp.float32) * 0.01
    w2 = jax.random.normal(k3, (d_hidden, d_emb), jnp.float32) / jnp.sqrt(d_hidden)
    b2 = jax.random.normal(k4, (d_emb,), jnp.float32) * 0.01
    return dict(w1=w1, b1=b1, w2=w2, b2=b2)


def pad_embedding_params(params, compute_dtype=COMPUTE_DTYPE):
    """Zero-pad weights to 128-lane shapes; matmul weights in bf16, biases f32."""
    w1, b1, w2, b2 = params["w1"], params["b1"], params["w2"], params["b2"]
    d_in, d_hidden = w1.shape
    d_emb = w2.shape[1]
    d_in_p = _round_up(d_in, LANE)
    h_p = _round_up(d_hidden, LANE)
    e_p = _round_up(d_emb, LANE)          # lane-dense output stores
    w1p = jnp.zeros((d_in_p, h_p), compute_dtype).at[:d_in, :d_hidden].set(
        w1.astype(compute_dtype))
    b1p = jnp.zeros((1, h_p), jnp.float32).at[0, :d_hidden].set(b1)
    w2p = jnp.zeros((h_p, e_p), compute_dtype).at[:d_hidden, :d_emb].set(
        w2.astype(compute_dtype))
    b2p = jnp.zeros((1, e_p), jnp.float32).at[0, :d_emb].set(b2)
    return (w1p, b1p, w2p, b2p)


def _batch_tiling(b):
    """Pick (tile_n, n_pad): 16-aligned rows, big tiles, >=2 grid steps when possible."""
    n_rows = _round_up(max(b, 1), ROW_TILE)
    grid = _cdiv(n_rows, MAX_TILE_N)
    if grid == 1 and n_rows >= 2 * ROW_TILE:
        grid = 2                          # keep both v7x TensorCores busy
    tile_n = _round_up(_cdiv(n_rows, grid), ROW_TILE)
    n_pad = tile_n * grid
    return tile_n, n_pad


def _prep_input(x, n_pad, d_in_p, dtype=COMPUTE_DTYPE):
    """Flatten + cast to bf16 in one pass; pad (if needed) in bf16."""
    b = x.shape[0]
    xf = x.reshape(b, -1).astype(dtype)
    d_in = xf.shape[1]
    if (b, d_in) != (n_pad, d_in_p):
        xf = jnp.pad(xf, ((0, n_pad - b), (0, d_in_p - d_in)))
    return xf


def _compiler_params():
    # 32 MiB scoped VMEM is safe on every generation (v7x: 64 MiB physical) and
    # comfortably fits the ~12 MiB double-buffered working set at 512-row tiles.
    return pltpu.CompilerParams(
        dimension_semantics=("parallel",),          # batch tiles -> 2 TCs on v7x
        vmem_limit_bytes=32 * 1024 * 1024)


# --------------------------- QuadrupletNet API ----------------------------- #
def quadruplet_net_forward(padded_params, x1, x2, x3, x4, *, d_emb):
    """Shared-weight embedding of 4 inputs in one Pallas call (no HBM concat/split)."""
    w1p, b1p, w2p, b2p = padded_params
    d_in_p, h_p = w1p.shape
    e_p = w2p.shape[1]
    b = x1.shape[0]
    tile_n, n_pad = _batch_tiling(b)
    xs = [_prep_input(x, n_pad, d_in_p) for x in (x1, x2, x3, x4)]

    grid = (n_pad // tile_n,)
    x_spec = pl.BlockSpec((tile_n, d_in_p), lambda i: (i, 0))
    o_spec = pl.BlockSpec((tile_n, e_p), lambda i: (i, 0))
    w1_spec = pl.BlockSpec(w1p.shape, lambda i: (0, 0))   # VMEM-resident weights
    b1_spec = pl.BlockSpec(b1p.shape, lambda i: (0, 0))
    w2_spec = pl.BlockSpec(w2p.shape, lambda i: (0, 0))
    b2_spec = pl.BlockSpec(b2p.shape, lambda i: (0, 0))

    flops = 2 * 4 * n_pad * (d_in_p * h_p + h_p * e_p)
    bytes_accessed = (4 * xs[0].size * xs[0].dtype.itemsize
                      + w1p.size * w1p.dtype.itemsize
                      + b1p.size * b1p.dtype.itemsize
                      + w2p.size * w2p.dtype.itemsize
                      + b2p.size * b2p.dtype.itemsize
                      + 4 * n_pad * e_p * 4)

    outs = pl.pallas_call(
        _quadruplet_kernel,
        out_shape=tuple(jax.ShapeDtypeStruct((n_pad, e_p), jnp.float32)
                        for _ in range(4)),
        grid=grid,
        in_specs=[x_spec, x_spec, x_spec, x_spec,
                  w1_spec, b1_spec, w2_spec, b2_spec],
        out_specs=(o_spec, o_spec, o_spec, o_spec),
        compiler_params=_compiler_params(),
        cost_estimate=pl.CostEstimate(flops=flops, transcendentals=0,
                                      bytes_accessed=bytes_accessed),
    )(*xs, w1p, b1p, w2p, b2p)

    # Padded rows hold bias-only garbage; this slice must stay.
    return tuple(o[:b, :d_emb] for o in outs)


def get_embedding(padded_params, x, *, d_emb):
    w1p, b1p, w2p, b2p = padded_params
    d_in_p = w1p.shape[0]
    e_p = w2p.shape[1]
    b = x.shape[0]
    tile_n, n_pad = _batch_tiling(b)
    xf = _prep_input(x, n_pad, d_in_p)

    out = pl.pallas_call(
        _single_kernel,
        out_shape=jax.ShapeDtypeStruct((n_pad, e_p), jnp.float32),
        grid=(n_pad // tile_n,),
        in_specs=[pl.BlockSpec((tile_n, d_in_p), lambda i: (i, 0)),
                  pl.BlockSpec(w1p.shape, lambda i: (0, 0)),
                  pl.BlockSpec(b1p.shape, lambda i: (0, 0)),
                  pl.BlockSpec(w2p.shape, lambda i: (0, 0)),
                  pl.BlockSpec(b2p.shape, lambda i: (0, 0))],
        out_specs=pl.BlockSpec((tile_n, e_p), lambda i: (i, 0)),
        compiler_params=_compiler_params(),
    )(xf, w1p, b1p, w2p, b2p)
    return out[:b, :d_emb]


# --------------------------------- main ------------------------------------ #
if __name__ == "__main__":
    B, C, H, W = 2, 4, 16, 16
    D_IN = C * H * W          # 1024
    D_HIDDEN = 64
    D_EMB = 32

    key = jax.random.PRNGKey(0)
    kx, kp = jax.random.split(key)
    kx1, kx2, kx3, kx4 = jax.random.split(kx, 4)
    x1 = jax.random.normal(kx1, (B, C, H, W), jnp.float32)
    x2 = jax.random.normal(kx2, (B, C, H, W), jnp.float32)
    x3 = jax.random.normal(kx3, (B, C, H, W), jnp.float32)
    x4 = jax.random.normal(kx4, (B, C, H, W), jnp.float32)

    params = make_embedding_params(kp, D_IN, D_HIDDEN, D_EMB)
    padded = pad_embedding_params(params)

    fwd = jax.jit(quadruplet_net_forward, static_argnames=("d_emb",))
    o1, o2, o3, o4 = fwd(padded, x1, x2, x3, x4, d_emb=D_EMB)
    jax.block_until_ready((o1, o2, o3, o4))

    emb = jax.jit(get_embedding, static_argnames=("d_emb",))(padded, x1, d_emb=D_EMB)
    jax.block_until_ready(emb)

    # Plain-JAX reference with the same bf16 operand / f32 accumulate recipe.
    def ref_embed(x):
        cd = COMPUTE_DTYPE
        xf = x.reshape(x.shape[0], -1)
        h = jnp.dot(xf.astype(cd), params["w1"].astype(cd),
                    preferred_element_type=jnp.float32) + params["b1"]
        h = jnp.maximum(h, 0.0)
        return jnp.dot(h.astype(cd), params["w2"].astype(cd),
                       preferred_element_type=jnp.float32) + params["b2"]

    for out, xin in ((o1, x1), (o2, x2), (o3, x3), (o4, x4)):
        assert out.shape == (B, D_EMB)
        assert jnp.allclose(out, ref_embed(xin), atol=2e-3, rtol=2e-3)
    assert emb.shape == (B, D_EMB)
    assert jnp.allclose(emb, ref_embed(x1), atol=2e-3, rtol=2e-3)

    print("KERNEL_OK")
</pallas_src>

<mosaic_0001>
module attributes {stable_mosaic.version = 11 : i64} {
  func.func @_quadruplet_kernel(%arg0: i32, %arg1: memref<16x1024xbf16, #tpu.memory_space<vmem>>, %arg2: memref<16x1024xbf16, #tpu.memory_space<vmem>>, %arg3: memref<16x1024xbf16, #tpu.memory_space<vmem>>, %arg4: memref<16x1024xbf16, #tpu.memory_space<vmem>>, %arg5: memref<1024x128xbf16, #tpu.memory_space<vmem>>, %arg6: memref<1x128xf32, #tpu.memory_space<vmem>>, %arg7: memref<128x128xbf16, #tpu.memory_space<vmem>>, %arg8: memref<1x128xf32, #tpu.memory_space<vmem>>, %arg9: memref<16x128xf32, #tpu.memory_space<vmem>>, %arg10: memref<16x128xf32, #tpu.memory_space<vmem>>, %arg11: memref<16x128xf32, #tpu.memory_space<vmem>>, %arg12: memref<16x128xf32, #tpu.memory_space<vmem>>) attributes {dimension_semantics = [#tpu.dimension_semantics<parallel>], iteration_bounds = array<i64: 1>, scalar_prefetch = 0 : i64, scratch_operands = 0 : i64, tpu.core_type = #tpu.core_type<tc>, window_params = [{transform_indices = @transform_0, window_bounds = array<i64: 16, 1024>}, {transform_indices = @transform_1, window_bounds = array<i64: 16, 1024>}, {transform_indices = @transform_2, window_bounds = array<i64: 16, 1024>}, {transform_indices = @transform_3, window_bounds = array<i64: 16, 1024>}, {pipeline_mode = #tpu.pipeline_mode<synchronous>, transform_indices = @transform_4, window_bounds = array<i64: 1024, 128>}, {pipeline_mode = #tpu.pipeline_mode<synchronous>, transform_indices = @transform_5, window_bounds = array<i64: 1, 128>}, {pipeline_mode = #tpu.pipeline_mode<synchronous>, transform_indices = @transform_6, window_bounds = array<i64: 128, 128>}, {pipeline_mode = #tpu.pipeline_mode<synchronous>, transform_indices = @transform_7, window_bounds = array<i64: 1, 128>}, {transform_indices = @transform_8, window_bounds = array<i64: 16, 128>}, {transform_indices = @transform_9, window_bounds = array<i64: 16, 128>}, {transform_indices = @transform_10, window_bounds = array<i64: 16, 128>}, {transform_indices = @transform_11, window_bounds = array<i64: 16, 128>}]} {
    %c0 = arith.constant 0 : index
    %c0_0 = arith.constant 0 : index
    %0 = vector.load %arg5[%c0, %c0_0] : memref<1024x128xbf16, #tpu.memory_space<vmem>>, vector<1024x128xbf16>
    %c0_1 = arith.constant 0 : index
    %c0_2 = arith.constant 0 : index
    %1 = vector.load %arg6[%c0_1, %c0_2] : memref<1x128xf32, #tpu.memory_space<vmem>>, vector<1x128xf32>
    %c0_3 = arith.constant 0 : index
    %c0_4 = arith.constant 0 : index
    %2 = vector.load %arg7[%c0_3, %c0_4] : memref<128x128xbf16, #tpu.memory_space<vmem>>, vector<128x128xbf16>
    %c0_5 = arith.constant 0 : index
    %c0_6 = arith.constant 0 : index
    %3 = vector.load %arg8[%c0_5, %c0_6] : memref<1x128xf32, #tpu.memory_space<vmem>>, vector<1x128xf32>
    %c0_7 = arith.constant 0 : index
    %c0_8 = arith.constant 0 : index
    %4 = vector.load %arg1[%c0_7, %c0_8] : memref<16x1024xbf16, #tpu.memory_space<vmem>>, vector<16x1024xbf16>
    %cst = arith.constant dense<0.000000e+00> : vector<16x128xf32>
    %5 = tpu.matmul %4, %0, %cst {dimension_numbers = #tpu.dot_dimension_numbers<[1], [0], [0], [1], [0, 0, 1, 1], [], []>} : vector<16x1024xbf16>, vector<1024x128xbf16>, vector<16x128xf32> -> vector<16x128xf32>
    %6 = vector.broadcast %1 : vector<1x128xf32> to vector<16x128xf32>
    %7 = arith.addf %5, %6 : vector<16x128xf32>
    %cst_9 = arith.constant 0.000000e+00 : f32
    %8 = vector.broadcast %cst_9 : f32 to vector<16x128xf32>
    %9 = arith.maximumf %7, %8 : vector<16x128xf32>
    %10 = arith.truncf %9 : vector<16x128xf32> to vector<16x128xbf16>
    %cst_10 = arith.constant dense<0.000000e+00> : vector<16x128xf32>
    %11 = tpu.matmul %10, %2, %cst_10 {dimension_numbers = #tpu.dot_dimension_numbers<[1], [0], [0], [1], [0, 0, 1, 1], [], []>} : vector<16x128xbf16>, vector<128x128xbf16>, vector<16x128xf32> -> vector<16x128xf32>
    %12 = vector.broadcast %3 : vector<1x128xf32> to vector<16x128xf32>
    %13 = arith.addf %11, %12 : vector<16x128xf32>
    %c0_11 = arith.constant 0 : index
    %c0_12 = arith.constant 0 : index
    %14 = vector.load %arg9[%c0_11, %c0_12] : memref<16x128xf32, #tpu.memory_space<vmem>>, vector<16x128xf32>
    tpu.vector_store %arg9[%c0_11, %c0_12], %13 {strides = array<i32>} : memref<16x128xf32, #tpu.memory_space<vmem>>, vector<16x128xf32>,
    %c0_13 = arith.constant 0 : index
    %c0_14 = arith.constant 0 : index
    %15 = vector.load %arg2[%c0_13, %c0_14] : memref<16x1024xbf16, #tpu.memory_space<vmem>>, vector<16x1024xbf16>
    %cst_15 = arith.constant dense<0.000000e+00> : vector<16x128xf32>
    %16 = tpu.matmul %15, %0, %cst_15 {dimension_numbers = #tpu.dot_dimension_numbers<[1], [0], [0], [1], [0, 0, 1, 1], [], []>} : vector<16x1024xbf16>, vector<1024x128xbf16>, vector<16x128xf32> -> vector<16x128xf32>
    %17 = vector.broadcast %1 : vector<1x128xf32> to vector<16x128xf32>
    %18 = arith.addf %16, %17 : vector<16x128xf32>
    %cst_16 = arith.constant 0.000000e+00 : f32
    %19 = vector.broadcast %cst_16 : f32 to vector<16x128xf32>
    %20 = arith.maximumf %18, %19 : vector<16x128xf32>
    %21 = arith.truncf %20 : vector<16x128xf32> to vector<16x128xbf16>
    %cst_17 = arith.constant dense<0.000000e+00> : vector<16x128xf32>
    %22 = tpu.matmul %21, %2, %cst_17 {dimension_numbers = #tpu.dot_dimension_numbers<[1], [0], [0], [1], [0, 0, 1, 1], [], []>} : vector<16x128xbf16>, vector<128x128xbf16>, vector<16x128xf32> -> vector<16x128xf32>
    %23 = vector.broadcast %3 : vector<1x128xf32> to vector<16x128xf32>
    %24 = arith.addf %22, %23 : vector<16x128xf32>
    %c0_18 = arith.constant 0 : index
    %c0_19 = arith.constant 0 : index
    %25 = vector.load %arg10[%c0_18, %c0_19] : memref<16x128xf32, #tpu.memory_space<vmem>>, vector<16x128xf32>
    tpu.vector_store %arg10[%c0_18, %c0_19], %24 {strides = array<i32>} : memref<16x128xf32, #tpu.memory_space<vmem>>, vector<16x128xf32>,
    %c0_20 = arith.constant 0 : index
    %c0_21 = arith.constant 0 : index
    %26 = vector.load %arg3[%c0_20, %c0_21] : memref<16x1024xbf16, #tpu.memory_space<vmem>>, vector<16x1024xbf16>
    %cst_22 = arith.constant dense<0.000000e+00> : vector<16x128xf32>
    %27 = tpu.matmul %26, %0, %cst_22 {dimension_numbers = #tpu.dot_dimension_numbers<[1], [0], [0], [1], [0, 0, 1, 1], [], []>} : vector<16x1024xbf16>, vector<1024x128xbf16>, vector<16x128xf32> -> vector<16x128xf32>
    %28 = vector.broadcast %1 : vector<1x128xf32> to vector<16x128xf32>
    %29 = arith.addf %27, %28 : vector<16x128xf32>
    %cst_23 = arith.constant 0.000000e+00 : f32
    %30 = vector.broadcast %cst_23 : f32 to vector<16x128xf32>
    %31 = arith.maximumf %29, %30 : vector<16x128xf32>
    %32 = arith.truncf %31 : vector<16x128xf32> to vector<16x128xbf16>
    %cst_24 = arith.constant dense<0.000000e+00> : vector<16x128xf32>
    %33 = tpu.matmul %32, %2, %cst_24 {dimension_numbers = #tpu.dot_dimension_numbers<[1], [0], [0], [1], [0, 0, 1, 1], [], []>} : vector<16x128xbf16>, vector<128x128xbf16>, vector<16x128xf32> -> vector<16x128xf32>
    %34 = vector.broadcast %3 : vector<1x128xf32> to vector<16x128xf32>
    %35 = arith.addf %33, %34 : vector<16x128xf32>
    %c0_25 = arith.constant 0 : index
    %c0_26 = arith.constant 0 : index
    %36 = vector.load %arg11[%c0_25, %c0_26] : memref<16x128xf32, #tpu.memory_space<vmem>>, vector<16x128xf32>
    tpu.vector_store %arg11[%c0_25, %c0_26], %35 {strides = array<i32>} : memref<16x128xf32, #tpu.memory_space<vmem>>, vector<16x128xf32>,
    %c0_27 = arith.constant 0 : index
    %c0_28 = arith.constant 0 : index
    %37 = vector.load %arg4[%c0_27, %c0_28] : memref<16x1024xbf16, #tpu.memory_space<vmem>>, vector<16x1024xbf16>
    %cst_29 = arith.constant dense<0.000000e+00> : vector<16x128xf32>
    %38 = tpu.matmul %37, %0, %cst_29 {dimension_numbers = #tpu.dot_dimension_numbers<[1], [0], [0], [1], [0, 0, 1, 1], [], []>} : vector<16x1024xbf16>, vector<1024x128xbf16>, vector<16x128xf32> -> vector<16x128xf32>
    %39 = vector.broadcast %1 : vector<1x128xf32> to vector<16x128xf32>
    %40 = arith.addf %38, %39 : vector<16x128xf32>
    %cst_30 = arith.constant 0.000000e+00 : f32
    %41 = vector.broadcast %cst_30 : f32 to vector<16x128xf32>
    %42 = arith.maximumf %40, %41 : vector<16x128xf32>
    %43 = arith.truncf %42 : vector<16x128xf32> to vector<16x128xbf16>
    %cst_31 = arith.constant dense<0.000000e+00> : vector<16x128xf32>
    %44 = tpu.matmul %43, %2, %cst_31 {dimension_numbers = #tpu.dot_dimension_numbers<[1], [0], [0], [1], [0, 0, 1, 1], [], []>} : vector<16x128xbf16>, vector<128x128xbf16>, vector<16x128xf32> -> vector<16x128xf32>
    %45 = vector.broadcast %3 : vector<1x128xf32> to vector<16x128xf32>
    %46 = arith.addf %44, %45 : vector<16x128xf32>
    %c0_32 = arith.constant 0 : index
    %c0_33 = arith.constant 0 : index
    %47 = vector.load %arg12[%c0_32, %c0_33] : memref<16x128xf32, #tpu.memory_space<vmem>>, vector<16x128xf32>
    tpu.vector_store %arg12[%c0_32, %c0_33], %46 {strides = array<i32>} : memref<16x128xf32, #tpu.memory_space<vmem>>, vector<16x128xf32>,
    return
  }
  func.func @transform_0(%arg0: i32) -> (i32, i32) {
    %c0_i32 = arith.constant 0 : i32
    %c0_i32_0 = arith.constant 0 : i32
    return %arg0, %c0_i32 : i32, i32
  }
  func.func @transform_1(%arg0: i32) -> (i32, i32) {
    %c0_i32 = arith.constant 0 : i32
    %c0_i32_0 = arith.constant 0 : i32
    return %arg0, %c0_i32 : i32, i32
  }
  func.func @transform_2(%arg0: i32) -> (i32, i32) {
    %c0_i32 = arith.constant 0 : i32
    %c0_i32_0 = arith.constant 0 : i32
    return %arg0, %c0_i32 : i32, i32
  }
  func.func @transform_3(%arg0: i32) -> (i32, i32) {
    %c0_i32 = arith.constant 0 : i32
    %c0_i32_0 = arith.constant 0 : i32
    return %arg0, %c0_i32 : i32, i32
  }
  func.func @transform_4(%arg0: i32) -> (i32, i32) {
    %c0_i32 = arith.constant 0 : i32
    %c0_i32_0 = arith.constant 0 : i32
    %c0_i32_1 = arith.constant 0 : i32
    return %c0_i32, %c0_i32_0 : i32, i32
  }
  func.func @transform_5(%arg0: i32) -> (i32, i32) {
    %c0_i32 = arith.constant 0 : i32
    %c0_i32_0 = arith.constant 0 : i32
    %c0_i32_1 = arith.constant 0 : i32
    return %c0_i32, %c0_i32_0 : i32, i32
  }
  func.func @transform_6(%arg0: i32) -> (i32, i32) {
    %c0_i32 = arith.constant 0 : i32
    %c0_i32_0 = arith.constant 0 : i32
    %c0_i32_1 = arith.constant 0 : i32
    return %c0_i32, %c0_i32_0 : i32, i32
  }
  func.func @transform_7(%arg0: i32) -> (i32, i32) {
    %c0_i32 = arith.constant 0 : i32
    %c0_i32_0 = arith.constant 0 : i32
    %c0_i32_1 = arith.constant 0 : i32
    return %c0_i32, %c0_i32_0 : i32, i32
  }
  func.func @transform_8(%arg0: i32) -> (i32, i32) {
    %c0_i32 = arith.constant 0 : i32
    %c0_i32_0 = arith.constant 0 : i32
    return %arg0, %c0_i32 : i32, i32
  }
  func.func @transform_9(%arg0: i32) -> (i32, i32) {
    %c0_i32 = arith.constant 0 : i32
    %c0_i32_0 = arith.constant 0 : i32
    return %arg0, %c0_i32 : i32, i32
  }
  func.func @transform_10(%arg0: i32) -> (i32, i32) {
    %c0_i32 = arith.constant 0 : i32
    %c0_i32_0 = arith.constant 0 : i32
    return %arg0, %c0_i32 : i32, i32
  }
  func.func @transform_11(%arg0: i32) -> (i32, i32) {
    %c0_i32 = arith.constant 0 : i32
    %c0_i32_0 = arith.constant 0 : i32
    return %arg0, %c0_i32 : i32, i32
  }
}

</mosaic_0001>

<llo_original>
// kernel: quadruplet_net_forward.1
$region0: #{quadruplet_net_forward.1}
  #allocation0 [shape = 'u32[]', space=smem, size = 0x4, offset = 0x4, fixed_abs, tag = 'smem constant byte address 0x4 - core index']
  #allocation1 [shape = 'u32[144,128]{1,0:T(1,128)}', space=vmem, size = 0x12000, scoped, tag = 'internal scratch']
  %s0 = inlined_call_operand.vmem [shape: bf16[16,1024], index: 0, kind: input, shape index: {}]
  %s1 = inlined_call_operand.vmem [shape: bf16[16,1024], index: 1, kind: input, shape index: {}]
  %s2 = inlined_call_operand.vmem [shape: bf16[16,1024], index: 2, kind: input, shape index: {}]
  %s3 = inlined_call_operand.vmem [shape: bf16[16,1024], index: 3, kind: input, shape index: {}]
  %s4 = inlined_call_operand.vmem [shape: bf16[1024,128], index: 4, kind: input, shape index: {}]
  %s5 = inlined_call_operand.vmem [shape: f32[1,128], index: 5, kind: input, shape index: {}]
  %s6 = inlined_call_operand.vmem [shape: bf16[128,128], index: 6, kind: input, shape index: {}]
  %s7 = inlined_call_operand.vmem [shape: f32[1,128], index: 7, kind: input, shape index: {}]
  %s8 = inlined_call_operand.vmem [shape: f32[16,128], index: 8, kind: output, shape index: {0}]
  %s9 = inlined_call_operand.vmem [shape: f32[16,128], index: 9, kind: output, shape index: {1}]
  %s10 = inlined_call_operand.vmem [shape: f32[16,128], index: 10, kind: output, shape index: {2}]
  %s11 = inlined_call_operand.vmem [shape: f32[16,128], index: 11, kind: output, shape index: {3}]
  %12 = xla_tuple %s8, %s9, %s10, %s11
  %s13 = sld [smem:[#allocation0]]
  $region66: #{quadruplet_net_forward.1} parent=0
    _
  %s15 = ssub.s32 1, %s13
  %s16 = scalar_select 0, %s15, %s13
  // Predicated region
  $region2: #{quadruplet_net_forward.1} parent=0 // pred_check
    _
  $region3: #{quadruplet_net_forward.1} parent=0 // pred_check_branch
    %18 = sbr.rel (0) target = $region5
  $region4: #{quadruplet_net_forward.1} parent=0 // pred_region
    _
  $region5: #{quadruplet_net_forward.1} parent=0 // pred_fallthru
    _
  // Predicated region
  $region6: #{quadruplet_net_forward.1} parent=0 // pred_check
    _
  $region7: #{quadruplet_net_forward.1} parent=0 // pred_check_branch
    %20 = sbr.rel (0) target = $region9
  $region8: #{quadruplet_net_forward.1} parent=0 // pred_region
    _
  $region9: #{quadruplet_net_forward.1} parent=0 // pred_fallthru
    _
  // Predicated region
  $region10: #{quadruplet_net_forward.1} parent=0 // pred_check
    _
  $region11: #{quadruplet_net_forward.1} parent=0 // pred_check_branch
    %22 = sbr.rel (0) target = $region13
  $region12: #{quadruplet_net_forward.1} parent=0 // pred_region
    _
  $region13: #{quadruplet_net_forward.1} parent=0 // pred_fallthru
    _
  // Predicated region
  $region14: #{quadruplet_net_forward.1} parent=0 // pred_check
    _
  $region15: #{quadruplet_net_forward.1} parent=0 // pred_check_branch
    %24 = sbr.rel (0) target = $region17
  $region16: #{quadruplet_net_forward.1} parent=0 // pred_region
    _
  $region17: #{quadruplet_net_forward.1} parent=0 // pred_fallthru
    _
  // Predicated region
  $region18: #{quadruplet_net_forward.1} parent=0 // pred_check
    _
  $region19: #{quadruplet_net_forward.1} parent=0 // pred_check_branch
    %26 = sbr.rel (0) target = $region21
  $region20: #{quadruplet_net_forward.1} parent=0 // pred_region
    _
  $region21: #{quadruplet_net_forward.1} parent=0 // pred_fallthru
    _
  // Predicated region
  $region22: #{quadruplet_net_forward.1} parent=0 // pred_check
    _
  $region23: #{quadruplet_net_forward.1} parent=0 // pred_check_branch
    %28 = sbr.rel (0) target = $region25
  $region24: #{quadruplet_net_forward.1} parent=0 // pred_region
    _
  $region25: #{quadruplet_net_forward.1} parent=0 // pred_fallthru
    _
  // Predicated region
  $region26: #{quadruplet_net_forward.1} parent=0 // pred_check
    _
  $region27: #{quadruplet_net_forward.1} parent=0 // pred_check_branch
    %30 = sbr.rel (0) target = $region29
  $region28: #{quadruplet_net_forward.1} parent=0 // pred_region
    _
  $region29: #{quadruplet_net_forward.1} parent=0 // pred_fallthru
    _
  // Predicated region
  $region30: #{quadruplet_net_forward.1} parent=0 // pred_check
    _
  $region31: #{quadruplet_net_forward.1} parent=0 // pred_check_branch
    %32 = sbr.rel (0) target = $region33
  $region32: #{quadruplet_net_forward.1} parent=0 // pred_region
    _
  $region33: #{quadruplet_net_forward.1} parent=0 // pred_fallthru
    _
  %v34 = vld [vmem:[%s4] sm:$0xf]
  %v35 = vld [vmem:[%s4 + $0x4] sm:$0xf]
  %v36 = vld [vmem:[%s4 + $0x8] sm:$0xf]
  %v37 = vld [vmem:[%s4 + $0xc] sm:$0xf]
  %v38 = vld [vmem:[%s4 + $0x10] sm:$0xf]
  %v39 = vld [vmem:[%s4 + $0x14] sm:$0xf]
  %v40 = vld [vmem:[%s4 + $0x18] sm:$0xf]
  %v41 = vld [vmem:[%s4 + $0x1c] sm:$0xf]
  %v42 = vld [vmem:[%s4 + $0x20] sm:$0xf]
  %v43 = vld [vmem:[%s4 + $0x24] sm:$0xf]
  %v44 = vld [vmem:[%s4 + $0x28] sm:$0xf]
  %v45 = vld [vmem:[%s4 + $0x2c] sm:$0xf]
  %v46 = vld [vmem:[%s4 + $0x30] sm:$0xf]
  %v47 = vld [vmem:[%s4 + $0x34] sm:$0xf]
  %v48 = vld [vmem:[%s4 + $0x38] sm:$0xf]
  %v49 = vld [vmem:[%s4 + $0x3c] sm:$0xf]
  %v50 = vld [vmem:[%s4 + $0x40] sm:$0xf]
  %v51 = vld [vmem:[%s4 + $0x44] sm:$0xf]
  %v52 = vld [vmem:[%s4 + $0x48] sm:$0xf]
  %v53 = vld [vmem:[%s4 + $0x4c] sm:$0xf]
  %v54 = vld [vmem:[%s4 + $0x50] sm:$0xf]
  %v55 = vld [vmem:[%s4 + $0x54] sm:$0xf]
  %v56 = vld [vmem:[%s4 + $0x58] sm:$0xf]
  %v57 = vld [vmem:[%s4 + $0x5c] sm:$0xf]
  %v58 = vld [vmem:[%s4 + $0x60] sm:$0xf]
  %v59 = vld [vmem:[%s4 + $0x64] sm:$0xf]
  %v60 = vld [vmem:[%s4 + $0x68] sm:$0xf]
  %v61 = vld [vmem:[%s4 + $0x6c] sm:$0xf]
  %v62 = vld [vmem:[%s4 + $0x70] sm:$0xf]
  %v63 = vld [vmem:[%s4 + $0x74] sm:$0xf]
  %v64 = vld [vmem:[%s4 + $0x78] sm:$0xf]
  %v65 = vld [vmem:[%s4 + $0x7c] sm:$0xf]
  %v66 = vld [vmem:[%s4 + $0x80] sm:$0xf]
  %v67 = vld [vmem:[%s4 + $0x84] sm:$0xf]
  %v68 = vld [vmem:[%s4 + $0x88] sm:$0xf]
  %v69 = vld [vmem:[%s4 + $0x8c] sm:$0xf]
  %v70 = vld [vmem:[%s4 + $0x90] sm:$0xf]
  %v71 = vld [vmem:[%s4 + $0x94] sm:$0xf]
  %v72 = vld [vmem:[%s4 + $0x98] sm:$0xf]
  %v73 = vld [vmem:[%s4 + $0x9c] sm:$0xf]
  %v74 = vld [vmem:[%s4 + $0xa0] sm:$0xf]
  %v75 = vld [vmem:[%s4 + $0xa4] sm:$0xf]
  %v76 = vld [vmem:[%s4 + $0xa8] sm:$0xf]
  %v77 = vld [vmem:[%s4 + $0xac] sm:$0xf]
  %v78 = vld [vmem:[%s4 + $0xb0] sm:$0xf]
  %v79 = vld [vmem:[%s4 + $0xb4] sm:$0xf]
  %v80 = vld [vmem:[%s4 + $0xb8] sm:$0xf]
  %v81 = vld [vmem:[%s4 + $0xbc] sm:$0xf]
  %v82 = vld [vmem:[%s4 + $0xc0] sm:$0xf]
  %v83 = vld [vmem:[%s4 + $0xc4] sm:$0xf]
  %v84 = vld [vmem:[%s4 + $0xc8] sm:$0xf]
  %v85 = vld [vmem:[%s4 + $0xcc] sm:$0xf]
  %v86 = vld [vmem:[%s4 + $0xd0] sm:$0xf]
  %v87 = vld [vmem:[%s4 + $0xd4] sm:$0xf]
  %v88 = vld [vmem:[%s4 + $0xd8] sm:$0xf]
  %v89 = vld [vmem:[%s4 + $0xdc] sm:$0xf]
  %v90 = vld [vmem:[%s4 + $0xe0] sm:$0xf]
  %v91 = vld [vmem:[%s4 + $0xe4] sm:$0xf]
  %v92 = vld [vmem:[%s4 + $0xe8] sm:$0xf]
  %v93 = vld [vmem:[%s4 + $0xec] sm:$0xf]
  %v94 = vld [vmem:[%s4 + $0xf0] sm:$0xf]
  %v95 = vld [vmem:[%s4 + $0xf4] sm:$0xf]
  %v96 = vld [vmem:[%s4 + $0xf8] sm:$0xf]
  %v97 = vld [vmem:[%s4 + $0xfc] sm:$0xf]
  %v98 = vld [vmem:[%s4 + $0x100] sm:$0xf]
  %v99 = vld [vmem:[%s4 + $0x104] sm:$0xf]
  %v100 = vld [vmem:[%s4 + $0x108] sm:$0xf]
  %v101 = vld [vmem:[%s4 + $0x10c] sm:$0xf]
  %v102 = vld [vmem:[%s4 + $0x110] sm:$0xf]
  %v103 = vld [vmem:[%s4 + $0x114] sm:$0xf]
  %v104 = vld [vmem:[%s4 + $0x118] sm:$0xf]
  %v105 = vld [vmem:[%s4 + $0x11c] sm:$0xf]
  %v106 = vld [vmem:[%s4 + $0x120] sm:$0xf]
  %v107 = vld [vmem:[%s4 + $0x124] sm:$0xf]
  %v108 = vld [vmem:[%s4 + $0x128] sm:$0xf]
  %v109 = vld [vmem:[%s4 + $0x12c] sm:$0xf]
  %v110 = vld [vmem:[%s4 + $0x130] sm:$0xf]
  %v111 = vld [vmem:[%s4 + $0x134] sm:$0xf]
  %v112 = vld [vmem:[%s4 + $0x138] sm:$0xf]
  %v113 = vld [vmem:[%s4 + $0x13c] sm:$0xf]
  %v114 = vld [vmem:[%s4 + $0x140] sm:$0xf]
  %v115 = vld [vmem:[%s4 + $0x144] sm:$0xf]
  %v116 = vld [vmem:[%s4 + $0x148] sm:$0xf]
  %v117 = vld [vmem:[%s4 + $0x14c] sm:$0xf]
  %v118 = vld [vmem:[%s4 + $0x150] sm:$0xf]
  %v119 = vld [vmem:[%s4 + $0x154] sm:$0xf]
  %v120 = vld [vmem:[%s4 + $0x158] sm:$0xf]
  %v121 = vld [vmem:[%s4 + $0x15c] sm:$0xf]
  %v122 = vld [vmem:[%s4 + $0x160] sm:$0xf]
  %v123 = vld [vmem:[%s4 + $0x164] sm:$0xf]
  %v124 = vld [vmem:[%s4 + $0x168] sm:$0xf]
  %v125 = vld [vmem:[%s4 + $0x16c] sm:$0xf]
  %v126 = vld [vmem:[%s4 + $0x170] sm:$0xf]
  %v127 = vld [vmem:[%s4 + $0x174] sm:$0xf]
  %v128 = vld [vmem:[%s4 + $0x178] sm:$0xf]
  %v129 = vld [vmem:[%s4 + $0x17c] sm:$0xf]
  %v130 = vld [vmem:[%s4 + $0x180] sm:$0xf]
  %v131 = vld [vmem:[%s4 + $0x184] sm:$0xf]
  %v132 = vld [vmem:[%s4 + $0x188] sm:$0xf]
  %v133 = vld [vmem:[%s4 + $0x18c] sm:$0xf]
  %v134 = vld [vmem:[%s4 + $0x190] sm:$0xf]
  %v135 = vld [vmem:[%s4 + $0x194] sm:$0xf]
  %v136 = vld [vmem:[%s4 + $0x198] sm:$0xf]
  %v137 = vld [vmem:[%s4 + $0x19c] sm:$0xf]
  %v138 = vld [vmem:[%s4 + $0x1a0] sm:$0xf]
  %v139 = vld [vmem:[%s4 + $0x1a4] sm:$0xf]
  %v140 = vld [vmem:[%s4 + $0x1a8] sm:$0xf]
  %v141 = vld [vmem:[%s4 + $0x1ac] sm:$0xf]
  %v142 = vld [vmem:[%s4 + $0x1b0] sm:$0xf]
  %v143 = vld [vmem:[%s4 + $0x1b4] sm:$0xf]
  %v144 = vld [vmem:[%s4 + $0x1b8] sm:$0xf]
  %v145 = vld [vmem:[%s4 + $0x1bc] sm:$0xf]
  %v146 = vld [vmem:[%s4 + $0x1c0] sm:$0xf]
  %v147 = vld [vmem:[%s4 + $0x1c4] sm:$0xf]
  %v148 = vld [vmem:[%s4 + $0x1c8] sm:$0xf]
  %v149 = vld [vmem:[%s4 + $0x1cc] sm:$0xf]
  %v150 = vld [vmem:[%s4 + $0x1d0] sm:$0xf]
  %v151 = vld [vmem:[%s4 + $0x1d4] sm:$0xf]
  %v152 = vld [vmem:[%s4 + $0x1d8] sm:$0xf]
  %v153 = vld [vmem:[%s4 + $0x1dc] sm:$0xf]
  %v154 = vld [vmem:[%s4 + $0x1e0] sm:$0xf]
  %v155 = vld [vmem:[%s4 + $0x1e4] sm:$0xf]
  %v156 = vld [vmem:[%s4 + $0x1e8] sm:$0xf]
  %v157 = vld [vmem:[%s4 + $0x1ec] sm:$0xf]
  %v158 = vld [vmem:[%s4 + $0x1f0] sm:$0xf]
  %v159 = vld [vmem:[%s4 + $0x1f4] sm:$0xf]
  %v160 = vld [vmem:[%s4 + $0x1f8] sm:$0xf]
  %v161 = vld [vmem:[%s4 + $0x1fc] sm:$0xf]
  %v162 = vld [vmem:[%s5] sm:$0x1]
  %v163 = vld [vmem:[%s6] sm:$0xf]
  %v164 = vld [vmem:[%s6 + $0x4] sm:$0xf]
  %v165 = vld [vmem:[%s6 + $0x8] sm:$0xf]
  %v166 = vld [vmem:[%s6 + $0xc] sm:$0xf]
  %v167 = vld [vmem:[%s6 + $0x10] sm:$0xf]
  %v168 = vld [vmem:[%s6 + $0x14] sm:$0xf]
  %v169 = vld [vmem:[%s6 + $0x18] sm:$0xf]
  %v170 = vld [vmem:[%s6 + $0x1c] sm:$0xf]
  %v171 = vld [vmem:[%s6 + $0x20] sm:$0xf]
  %v172 = vld [vmem:[%s6 + $0x24] sm:$0xf]
  %v173 = vld [vmem:[%s6 + $0x28] sm:$0xf]
  %v174 = vld [vmem:[%s6 + $0x2c] sm:$0xf]
  %v175 = vld [vmem:[%s6 + $0x30] sm:$0xf]
  %v176 = vld [vmem:[%s6 + $0x34] sm:$0xf]
  %v177 = vld [vmem:[%s6 + $0x38] sm:$0xf]
  %v178 = vld [vmem:[%s6 + $0x3c] sm:$0xf]
  %v179 = vld [vmem:[%s7] sm:$0x1]
  %v180 = vld [vmem:[%s0] sm:$0xff]
  %v181 = vld [vmem:[%s0 + $0x8] sm:$0xff]
  %v182 = vld [vmem:[%s0 + $0x10] sm:$0xff]
  %v183 = vld [vmem:[%s0 + $0x18] sm:$0xff]
  %v184 = vld [vmem:[%s0 + $0x20] sm:$0xff]
  %v185 = vld [vmem:[%s0 + $0x28] sm:$0xff]
  %v186 = vld [vmem:[%s0 + $0x30] sm:$0xff]
  %v187 = vld [vmem:[%s0 + $0x38] sm:$0xff]
  %v189 = vlaneseq
  %v190 = vshrl.u32 %v189, 7
  %v191 = vsub.s32 0, %v190
  %v192 = vrot.slane %v162, %v191
  %v202 = vunpack.c.l.b16 %v180
  %v203 = vunpack.c.h.b16 %v180
  %v204 = vunpack.c.l.b16 %v181
  %v205 = vunpack.c.h.b16 %v181
  %v206 = vunpack.c.l.b16 %v182
  %v207 = vunpack.c.h.b16 %v182
  %v208 = vunpack.c.l.b16 %v183
  %v209 = vunpack.c.h.b16 %v183
  %v210 = vunpack.c.l.b16 %v184
  %v211 = vunpack.c.h.b16 %v184
  %v212 = vunpack.c.l.b16 %v185
  %v213 = vunpack.c.h.b16 %v185
  %v214 = vunpack.c.l.b16 %v186
  %v215 = vunpack.c.h.b16 %v186
  %v216 = vunpack.c.l.b16 %v187
  %v217 = vunpack.c.h.b16 %v187
  %v218 = vpack.c.b16 %v210, %v202
  %v219 = vpack.c.b16 %v211, %v203
  %v220 = vpack.c.b16 %v212, %v204
  %v221 = vpack.c.b16 %v213, %v205
  %v222 = vpack.c.b16 %v214, %v206
  %v223 = vpack.c.b16 %v215, %v207
  %v224 = vpack.c.b16 %v216, %v208
  %v225 = vpack.c.b16 %v217, %v209
  %v362 = vunpack.c.l.b16 %v34
  %v363 = vunpack.c.l.b16 %v35
  %v364 = vunpack.c.l.b16 %v36
  %v365 = vunpack.c.l.b16 %v37
  %v366 = vunpack.c.l.b16 %v38
  %v367 = vunpack.c.l.b16 %v39
  %v368 = vunpack.c.l.b16 %v40
  %v369 = vunpack.c.l.b16 %v41
  %v370 = vunpack.c.l.b16 %v42
  %v371 = vunpack.c.l.b16 %v43
  %v372 = vunpack.c.l.b16 %v44
  %v373 = vunpack.c.l.b16 %v45
  %v374 = vunpack.c.l.b16 %v46
  %v375 = vunpack.c.l.b16 %v47
  %v376 = vunpack.c.l.b16 %v48
  %v377 = vunpack.c.l.b16 %v49
  %v378 = vunpack.c.l.b16 %v50
  %v379 = vunpack.c.l.b16 %v51
  %v380 = vunpack.c.l.b16 %v52
  %v381 = vunpack.c.l.b16 %v53
  %v382 = vunpack.c.l.b16 %v54
  %v383 = vunpack.c.l.b16 %v55
  %v384 = vunpack.c.l.b16 %v56
  %v385 = vunpack.c.l.b16 %v57
  %v386 = vunpack.c.l.b16 %v58
  %v387 = vunpack.c.l.b16 %v59
  %v388 = vunpack.c.l.b16 %v60
  %v389 = vunpack.c.l.b16 %v61
  %v390 = vunpack.c.l.b16 %v62
  %v391 = vunpack.c.l.b16 %v63
  %v392 = vunpack.c.l.b16 %v64
  %v393 = vunpack.c.l.b16 %v65
  %v394 = vunpack.c.l.b16 %v66
  %v395 = vunpack.c.l.b16 %v67
  %v396 = vunpack.c.l.b16 %v68
  %v397 = vunpack.c.l.b16 %v69
  %v398 = vunpack.c.l.b16 %v70
  %v399 = vunpack.c.l.b16 %v71
  %v400 = vunpack.c.l.b16 %v72
  %v401 = vunpack.c.l.b16 %v73
  %v402 = vunpack.c.l.b16 %v74
  %v403 = vunpack.c.l.b16 %v75
  %v404 = vunpack.c.l.b16 %v76
  %v405 = vunpack.c.l.b16 %v77
  %v406 = vunpack.c.l.b16 %v78
  %v407 = vunpack.c.l.b16 %v79
  %v408 = vunpack.c.l.b16 %v80
  %v409 = vunpack.c.l.b16 %v81
  %v410 = vunpack.c.l.b16 %v82
  %v411 = vunpack.c.l.b16 %v83
  %v412 = vunpack.c.l.b16 %v84
  %v413 = vunpack.c.l.b16 %v85
  %v414 = vunpack.c.l.b16 %v86
  %v415 = vunpack.c.l.b16 %v87
  %v416 = vunpack.c.l.b16 %v88
  %v417 = vunpack.c.l.b16 %v89
  %v418 = vunpack.c.l.b16 %v90
  %v419 = vunpack.c.l.b16 %v91
  %v420 = vunpack.c.l.b16 %v92
  %v421 = vunpack.c.l.b16 %v93
  %v422 = vunpack.c.l.b16 %v94
  %v423 = vunpack.c.l.b16 %v95
  %v424 = vunpack.c.l.b16 %v96
  %v425 = vunpack.c.l.b16 %v97
  %v426 = vunpack.c.l.b16 %v98
  %v427 = vunpack.c.l.b16 %v99
  %v428 = vunpack.c.l.b16 %v100
  %v429 = vunpack.c.l.b16 %v101
  %v430 = vunpack.c.l.b16 %v102
  %v431 = vunpack.c.l.b16 %v103
  %v432 = vunpack.c.l.b16 %v104
  %v433 = vunpack.c.l.b16 %v105
  %v434 = vunpack.c.l.b16 %v106
  %v435 = vunpack.c.l.b16 %v107
  %v436 = vunpack.c.l.b16 %v108
  %v437 = vunpack.c.l.b16 %v109
  %v438 = vunpack.c.l.b16 %v110
  %v439 = vunpack.c.l.b16 %v111
  %v440 = vunpack.c.l.b16 %v112
  %v441 = vunpack.c.l.b16 %v113
  %v442 = vunpack.c.l.b16 %v114
  %v443 = vunpack.c.l.b16 %v115
  %v444 = vunpack.c.l.b16 %v116
  %v445 = vunpack.c.l.b16 %v117
  %v446 = vunpack.c.l.b16 %v118
  %v447 = vunpack.c.l.b16 %v119
  %v448 = vunpack.c.l.b16 %v120
  %v449 = vunpack.c.l.b16 %v121
  %v450 = vunpack.c.l.b16 %v122
  %v451 = vunpack.c.l.b16 %v123
  %v452 = vunpack.c.l.b16 %v124
  %v453 = vunpack.c.l.b16 %v125
  %v454 = vunpack.c.l.b16 %v126
  %v455 = vunpack.c.l.b16 %v127
  %v456 = vunpack.c.l.b16 %v128
  %v457 = vunpack.c.l.b16 %v129
  %v458 = vunpack.c.l.b16 %v130
  %v459 = vunpack.c.l.b16 %v131
  %v460 = vunpack.c.l.b16 %v132
  %v461 = vunpack.c.l.b16 %v133
  %v462 = vunpack.c.l.b16 %v134
  %v463 = vunpack.c.l.b16 %v135
  %v464 = vunpack.c.l.b16 %v136
  %v465 = vunpack.c.l.b16 %v137
  %v466 = vunpack.c.l.b16 %v138
  %v467 = vunpack.c.l.b16 %v139
  %v468 = vunpack.c.l.b16 %v140
  %v469 = vunpack.c.l.b16 %v141
  %v470 = vunpack.c.l.b16 %v142
  %v471 = vunpack.c.l.b16 %v143
  %v472 = vunpack.c.l.b16 %v144
  %v473 = vunpack.c.l.b16 %v145
  %v474 = vunpack.c.l.b16 %v146
  %v475 = vunpack.c.l.b16 %v147
  %v476 = vunpack.c.l.b16 %v148
  %v477 = vunpack.c.l.b16 %v149
  %v478 = vunpack.c.l.b16 %v150
  %v479 = vunpack.c.l.b16 %v151
  %v480 = vunpack.c.l.b16 %v152
  %v481 = vunpack.c.l.b16 %v153
  %v482 = vunpack.c.l.b16 %v154
  %v483 = vunpack.c.l.b16 %v155
  %v484 = vunpack.c.l.b16 %v156
  %v485 = vunpack.c.l.b16 %v157
  %v486 = vunpack.c.l.b16 %v158
  %v487 = vunpack.c.l.b16 %v159
  %v488 = vunpack.c.l.b16 %v160
  %v489 = vunpack.c.l.b16 %v161
  %v490 = vpack.c.b16 %v363, %v362
  %v491 = vpack.c.b16 %v365, %v364
  %v492 = vpack.c.b16 %v367, %v366
  %v493 = vpack.c.b16 %v369, %v368
  %v494 = vpack.c.b16 %v371, %v370
  %v495 = vpack.c.b16 %v373, %v372
  %v496 = vpack.c.b16 %v375, %v374
  %v497 = vpack.c.b16 %v377, %v376
  %v498 = vpack.c.b16 %v379, %v378
  %v499 = vpack.c.b16 %v381, %v380
  %v500 = vpack.c.b16 %v383, %v382
  %v501 = vpack.c.b16 %v385, %v384
  %v502 = vpack.c.b16 %v387, %v386
  %v503 = vpack.c.b16 %v389, %v388
  %v504 = vpack.c.b16 %v391, %v390
  %v505 = vpack.c.b16 %v393, %v392
  %v506 = vpack.c.b16 %v395, %v394
  %v507 = vpack.c.b16 %v397, %v396
  %v508 = vpack.c.b16 %v399, %v398
  %v509 = vpack.c.b16 %v401, %v400
  %v510 = vpack.c.b16 %v403, %v402
  %v511 = vpack.c.b16 %v405, %v404
  %v512 = vpack.c.b16 %v407, %v406
  %v513 = vpack.c.b16 %v409, %v408
  %v514 = vpack.c.b16 %v411, %v410
  %v515 = vpack.c.b16 %v413, %v412
  %v516 = vpack.c.b16 %v415, %v414
  %v517 = vpack.c.b16 %v417, %v416
  %v518 = vpack.c.b16 %v419, %v418
  %v519 = vpack.c.b16 %v421, %v420
  %v520 = vpack.c.b16 %v423, %v422
  %v521 = vpack.c.b16 %v425, %v424
  %v522 = vpack.c.b16 %v427, %v426
  %v523 = vpack.c.b16 %v429, %v428
  %v524 = vpack.c.b16 %v431, %v430
  %v525 = vpack.c.b16 %v433, %v432
  %v526 = vpack.c.b16 %v435, %v434
  %v527 = vpack.c.b16 %v437, %v436
  %v528 = vpack.c.b16 %v439, %v438
  %v529 = vpack.c.b16 %v441, %v440
  %v530 = vpack.c.b16 %v443, %v442
  %v531 = vpack.c.b16 %v445, %v444
  %v532 = vpack.c.b16 %v447, %v446
  %v533 = vpack.c.b16 %v449, %v448
  %v534 = vpack.c.b16 %v451, %v450
  %v535 = vpack.c.b16 %v453, %v452
  %v536 = vpack.c.b16 %v455, %v454
  %v537 = vpack.c.b16 %v457, %v456
  %v538 = vpack.c.b16 %v459, %v458
  %v539 = vpack.c.b16 %v461, %v460
  %v540 = vpack.c.b16 %v463, %v462
  %v541 = vpack.c.b16 %v465, %v464
  %v542 = vpack.c.b16 %v467, %v466
  %v543 = vpack.c.b16 %v469, %v468
  %v544 = vpack.c.b16 %v471, %v470
  %v545 = vpack.c.b16 %v473, %v472
  %v546 = vpack.c.b16 %v475, %v474
  %v547 = vpack.c.b16 %v477, %v476
  %v548 = vpack.c.b16 %v479, %v478
  %v549 = vpack.c.b16 %v481, %v480
  %v550 = vpack.c.b16 %v483, %v482
  %v551 = vpack.c.b16 %v485, %v484
  %v552 = vpack.c.b16 %v487, %v486
  %v553 = vpack.c.b16 %v489, %v488
  %618 = vmatprep.subr.bf16.mxu0 0
  %619 = vmatpush1.bf16.msra.mxu0 %v490
  %620 = vmatprep.subr.bf16.mxu0 0
  %621 = vmatpush1.bf16.msra.mxu0 %v491
  %622 = vmatprep.subr.bf16.mxu0 0
  %623 = vmatpush1.bf16.msra.mxu0 %v492
  %624 = vmatprep.subr.bf16.mxu0 0
  %625 = vmatpush1.bf16.msra.mxu0 %v493
  %626 = vmatprep.subr.bf16.mxu0 0
  %627 = vmatpush1.bf16.msra.mxu0 %v494
  %628 = vmatprep.subr.bf16.mxu0 0
  %629 = vmatpush1.bf16.msra.mxu0 %v495
  %630 = vmatprep.subr.bf16.mxu0 0
  %631 = vmatpush1.bf16.msra.mxu0 %v496
  %632 = vmatprep.subr.bf16.mxu0 0
  %633 = vmatpush1.bf16.msra.mxu0 %v497
  %634 = vmatprep.subr.bf16.mxu0 0
  %635 = vmatpush1.bf16.msra.mxu0 %v498
  %636 = vmatprep.subr.bf16.mxu0 0
  %637 = vmatpush1.bf16.msra.mxu0 %v499
  %638 = vmatprep.subr.bf16.mxu0 0
  %639 = vmatpush1.bf16.msra.mxu0 %v500
  %640 = vmatprep.subr.bf16.mxu0 0
  %641 = vmatpush1.bf16.msra.mxu0 %v501
  %642 = vmatprep.subr.bf16.mxu0 0
  %643 = vmatpush1.bf16.msra.mxu0 %v502
  %644 = vmatprep.subr.bf16.mxu0 0
  %645 = vmatpush1.bf16.msra.mxu0 %v503
  %646 = vmatprep.subr.bf16.mxu0 0
  %647 = vmatpush1.bf16.msra.mxu0 %v504
  %648 = vmatprep.subr.bf16.mxu0 0
  %649 = vmatpush1.bf16.msra.mxu0 %v505
  %650 = vmatprep.mubr.bf16.mxu0 %v219
  %651 = vmatmul.mubr.bf16.gmra.mrb[0].mxu0 %v218
  %v652 = vpop.f32.mrb[0].mxu0
  %v653 = vadd.f32 %v192, %v652
  %v654 = vpop.f32.mrb[0].mxu0
  %v655 = vpop.f32.mrb[0].mxu0
  %v656 = vadd.f32 %v192, %v655
  %v657 = vpop.f32.mrb[0].mxu0
  %658 = vdwg.mxu0
  %659 = vmatprep.subr.bf16.mxu0 0
  %660 = vmatpush1.bf16.msra.mxu0 %v506
  %661 = vmatprep.subr.bf16.mxu0 0
  %662 = vmatpush1.bf16.msra.mxu0 %v507
  %663 = vmatprep.subr.bf16.mxu0 0
  %664 = vmatpush1.bf16.msra.mxu0 %v508
  %665 = vmatprep.subr.bf16.mxu0 0
  %666 = vmatpush1.bf16.msra.mxu0 %v509
  %667 = vmatprep.subr.bf16.mxu0 0
  %668 = vmatpush1.bf16.msra.mxu0 %v510
  %669 = vmatprep.subr.bf16.mxu0 0
  %670 = vmatpush1.bf16.msra.mxu0 %v511
  %671 = vmatprep.subr.bf16.mxu0 0
  %672 = vmatpush1.bf16.msra.mxu0 %v512
  %673 = vmatprep.subr.bf16.mxu0 0
  %674 = vmatpush1.bf16.msra.mxu0 %v513
  %675 = vmatprep.subr.bf16.mxu0 0
  %676 = vmatpush1.bf16.msra.mxu0 %v514
  %677 = vmatprep.subr.bf16.mxu0 0
  %678 = vmatpush1.bf16.msra.mxu0 %v515
  %679 = vmatprep.subr.bf16.mxu0 0
  %680 = vmatpush1.bf16.msra.mxu0 %v516
  %681 = vmatprep.subr.bf16.mxu0 0
  %682 = vmatpush1.bf16.msra.mxu0 %v517
  %683 = vmatprep.subr.bf16.mxu0 0
  %684 = vmatpush1.bf16.msra.mxu0 %v518
  %685 = vmatprep.subr.bf16.mxu0 0
  %686 = vmatpush1.bf16.msra.mxu0 %v519
  %687 = vmatprep.subr.bf16.mxu0 0
  %688 = vmatpush1.bf16.msra.mxu0 %v520
  %689 = vmatprep.subr.bf16.mxu0 0
  %690 = vmatpush1.bf16.msra.mxu0 %v521
  %691 = vmatprep.mubr.bf16.mxu0 %v221
  %692 = vmatmul.mubr.bf16.gmra.mrb[0].mxu0 %v220
  %v693 = vpop.f32.mrb[0].mxu0
  %v694 = vadd.f32 %v653, %v693
  %v695 = vpop.f32.mrb[0].mxu0
  %v696 = vpop.f32.mrb[0].mxu0
  %v697 = vadd.f32 %v656, %v696
  %v698 = vpop.f32.mrb[0].mxu0
  %699 = vdwg.mxu0
  %700 = vmatprep.subr.bf16.mxu0 0
  %701 = vmatpush1.bf16.msra.mxu0 %v522
  %702 = vmatprep.subr.bf16.mxu0 0
  %703 = vmatpush1.bf16.msra.mxu0 %v523
  %704 = vmatprep.subr.bf16.mxu0 0
  %705 = vmatpush1.bf16.msra.mxu0 %v524
  %706 = vmatprep.subr.bf16.mxu0 0
  %707 = vmatpush1.bf16.msra.mxu0 %v525
  %708 = vmatprep.subr.bf16.mxu0 0
  %709 = vmatpush1.bf16.msra.mxu0 %v526
  %710 = vmatprep.subr.bf16.mxu0 0
  %711 = vmatpush1.bf16.msra.mxu0 %v527
  %712 = vmatprep.subr.bf16.mxu0 0
  %713 = vmatpush1.bf16.msra.mxu0 %v528
  %714 = vmatprep.subr.bf16.mxu0 0
  %715 = vmatpush1.bf16.msra.mxu0 %v529
  %716 = vmatprep.subr.bf16.mxu0 0
  %717 = vmatpush1.bf16.msra.mxu0 %v530
  %718 = vmatprep.subr.bf16.mxu0 0
  %719 = vmatpush1.bf16.msra.mxu0 %v531
  %720 = vmatprep.subr.bf16.mxu0 0
  %721 = vmatpush1.bf16.msra.mxu0 %v532
  %722 = vmatprep.subr.bf16.mxu0 0
  %723 = vmatpush1.bf16.msra.mxu0 %v533
  %724 = vmatprep.subr.bf16.mxu0 0
  %725 = vmatpush1.bf16.msra.mxu0 %v534
  %726 = vmatprep.subr.bf16.mxu0 0
  %727 = vmatpush1.bf16.msra.mxu0 %v535
  %728 = vmatprep.subr.bf16.mxu0 0
  %729 = vmatpush1.bf16.msra.mxu0 %v536
  %730 = vmatprep.subr.bf16.mxu0 0
  %731 = vmatpush1.bf16.msra.mxu0 %v537
  %732 = vmatprep.mubr.bf16.mxu0 %v223
  %733 = vmatmul.mubr.bf16.gmra.mrb[0].mxu0 %v222
  %v734 = vpop.f32.mrb[0].mxu0
  %v735 = vadd.f32 %v694, %v734
  %v736 = vpop.f32.mrb[0].mxu0
  %v737 = vpop.f32.mrb[0].mxu0
  %v738 = vadd.f32 %v697, %v737
  %v739 = vpop.f32.mrb[0].mxu0
  %740 = vdwg.mxu0
  %741 = vmatprep.subr.bf16.mxu0 0
  %742 = vmatpush1.bf16.msra.mxu0 %v538
  %743 = vmatprep.subr.bf16.mxu0 0
  %744 = vmatpush1.bf16.msra.mxu0 %v539
  %745 = vmatprep.subr.bf16.mxu0 0
  %746 = vmatpush1.bf16.msra.mxu0 %v540
  %747 = vmatprep.subr.bf16.mxu0 0
  %748 = vmatpush1.bf16.msra.mxu0 %v541
  %749 = vmatprep.subr.bf16.mxu0 0
  %750 = vmatpush1.bf16.msra.mxu0 %v542
  %751 = vmatprep.subr.bf16.mxu0 0
  %752 = vmatpush1.bf16.msra.mxu0 %v543
  %753 = vmatprep.subr.bf16.mxu0 0
  %754 = vmatpush1.bf16.msra.mxu0 %v544
  %755 = vmatprep.subr.bf16.mxu0 0
  %756 = vmatpush1.bf16.msra.mxu0 %v545
  %757 = vmatprep.subr.bf16.mxu0 0
  %758 = vmatpush1.bf16.msra.mxu0 %v546
  %759 = vmatprep.subr.bf16.mxu0 0
  %760 = vmatpush1.bf16.msra.mxu0 %v547
  %761 = vmatprep.subr.bf16.mxu0 0
  %762 = vmatpush1.bf16.msra.mxu0 %v548
  %763 = vmatprep.subr.bf16.mxu0 0
  %764 = vmatpush1.bf16.msra.mxu0 %v549
  %765 = vmatprep.subr.bf16.mxu0 0
  %766 = vmatpush1.bf16.msra.mxu0 %v550
  %767 = vmatprep.subr.bf16.mxu0 0
  %768 = vmatpush1.bf16.msra.mxu0 %v551
  %769 = vmatprep.subr.bf16.mxu0 0
  %770 = vmatpush1.bf16.msra.mxu0 %v552
  %771 = vmatprep.subr.bf16.mxu0 0
  %772 = vmatpush1.bf16.msra.mxu0 %v553
  %773 = vmatprep.mubr.bf16.mxu0 %v225
  %774 = vmatmul.mubr.bf16.gmra.mrb[0].mxu0 %v224
  %v775 = vpop.f32.mrb[0].mxu0
  %v776 = vadd.f32 %v735, %v775
  %v777 = vpop.f32.mrb[0].mxu0
  %v778 = vpop.f32.mrb[0].mxu0
  %v779 = vadd.f32 %v738, %v778
  %v780 = vpop.f32.mrb[0].mxu0
  %781 = vdwg.mxu0
  %v782 = vmax.f32 %v776, 0.0
  %v783 = vmax.f32 %v779, 0.0
  %v784 = vpack.c.bf16 %v783, %v782
  %v786 = vlaneseq
  %v787 = vshrl.u32 %v786, 7
  %v788 = vsub.s32 0, %v787
  %v789 = vrot.slane %v179, %v788
  %v807 = vunpack.c.l.b16 %v163
  %v808 = vunpack.c.l.b16 %v164
  %v809 = vunpack.c.l.b16 %v165
  %v810 = vunpack.c.l.b16 %v166
  %v811 = vunpack.c.l.b16 %v167
  %v812 = vunpack.c.l.b16 %v168
  %v813 = vunpack.c.l.b16 %v169
  %v814 = vunpack.c.l.b16 %v170
  %v815 = vunpack.c.l.b16 %v171
  %v816 = vunpack.c.l.b16 %v172
  %v817 = vunpack.c.l.b16 %v173
  %v818 = vunpack.c.l.b16 %v174
  %v819 = vunpack.c.l.b16 %v175
  %v820 = vunpack.c.l.b16 %v176
  %v821 = vunpack.c.l.b16 %v177
  %v822 = vunpack.c.l.b16 %v178
  %v823 = vpack.c.b16 %v808, %v807
  %v824 = vpack.c.b16 %v810, %v809
  %v825 = vpack.c.b16 %v812, %v811
  %v826 = vpack.c.b16 %v814, %v813
  %v827 = vpack.c.b16 %v816, %v815
  %v828 = vpack.c.b16 %v818, %v817
  %v829 = vpack.c.b16 %v820, %v819
  %v830 = vpack.c.b16 %v822, %v821
  %839 = vmatprep.subr.bf16.mxu0 0
  %840 = vmatpush1.bf16.msra.mxu0 %v823
  %841 = vmatprep.subr.bf16.mxu0 0
  %842 = vmatpush1.bf16.msra.mxu0 %v824
  %843 = vmatprep.subr.bf16.mxu0 0
  %844 = vmatpush1.bf16.msra.mxu0 %v825
  %845 = vmatprep.subr.bf16.mxu0 0
  %846 = vmatpush1.bf16.msra.mxu0 %v826
  %847 = vmatprep.subr.bf16.mxu0 0
  %848 = vmatpush1.bf16.msra.mxu0 %v827
  %849 = vmatprep.subr.bf16.mxu0 0
  %850 = vmatpush1.bf16.msra.mxu0 %v828
  %851 = vmatprep.subr.bf16.mxu0 0
  %852 = vmatpush1.bf16.msra.mxu0 %v829
  %853 = vmatprep.subr.bf16.mxu0 0
  %854 = vmatpush1.bf16.msra.mxu0 %v830
  %855 = vmatprep.subr.bf16.mxu0 0
  %856 = vmatpush1.bf16.msra.mxu0 0
  %857 = vmatprep.subr.bf16.mxu0 0
  %858 = vmatpush1.bf16.msra.mxu0 0
  %859 = vmatprep.subr.bf16.mxu0 0
  %860 = vmatpush1.bf16.msra.mxu0 0
  %861 = vmatprep.subr.bf16.mxu0 0
  %862 = vmatpush1.bf16.msra.mxu0 0
  %863 = vmatprep.subr.bf16.mxu0 0
  %864 = vmatpush1.bf16.msra.mxu0 0
  %865 = vmatprep.subr.bf16.mxu0 0
  %866 = vmatpush1.bf16.msra.mxu0 0
  %867 = vmatprep.subr.bf16.mxu0 0
  %868 = vmatpush1.bf16.msra.mxu0 0
  %869 = vmatprep.subr.bf16.mxu0 0
  %870 = vmatpush1.bf16.msra.mxu0 0
  %871 = vmatprep.mubr.bf16.mxu0 0
  %872 = vmatmul.mubr.bf16.gmra.mrb[0].mxu0 %v784
  %v873 = vpop.f32.mrb[0].mxu0
  %v874 = vadd.f32 %v789, %v873
  %v875 = vpop.f32.mrb[0].mxu0
  %v876 = vpop.f32.mrb[0].mxu0
  %v877 = vadd.f32 %v789, %v876
  %v878 = vpop.f32.mrb[0].mxu0
  %879 = vdwg.mxu0
  %880 = vst [vmem:[%s8] sm:$0xff] %v874
  %881 = vst [vmem:[%s8 + $0x8] sm:$0xff] %v877
  %v882 = vld [vmem:[%s1] sm:$0xff]
  %v883 = vld [vmem:[%s1 + $0x8] sm:$0xff]
  %v884 = vld [vmem:[%s1 + $0x10] sm:$0xff]
  %v885 = vld [vmem:[%s1 + $0x18] sm:$0xff]
  %v886 = vld [vmem:[%s1 + $0x20] sm:$0xff]
  %v887 = vld [vmem:[%s1 + $0x28] sm:$0xff]
  %v888 = vld [vmem:[%s1 + $0x30] sm:$0xff]
  %v889 = vld [vmem:[%s1 + $0x38] sm:$0xff]
  %v898 = vunpack.c.l.b16 %v882
  %v899 = vunpack.c.h.b16 %v882
  %v900 = vunpack.c.l.b16 %v883
  %v901 = vunpack.c.h.b16 %v883
  %v902 = vunpack.c.l.b16 %v884
  %v903 = vunpack.c.h.b16 %v884
  %v904 = vunpack.c.l.b16 %v885
  %v905 = vunpack.c.h.b16 %v885
  %v906 = vunpack.c.l.b16 %v886
  %v907 = vunpack.c.h.b16 %v886
  %v908 = vunpack.c.l.b16 %v887
  %v909 = vunpack.c.h.b16 %v887
  %v910 = vunpack.c.l.b16 %v888
  %v911 = vunpack.c.h.b16 %v888
  %v912 = vunpack.c.l.b16 %v889
  %v913 = vunpack.c.h.b16 %v889
  %v914 = vpack.c.b16 %v906, %v898
  %v915 = vpack.c.b16 %v907, %v899
  %v916 = vpack.c.b16 %v908, %v900
  %v917 = vpack.c.b16 %v909, %v901
  %v918 = vpack.c.b16 %v910, %v902
  %v919 = vpack.c.b16 %v911, %v903
  %v920 = vpack.c.b16 %v912, %v904
  %v921 = vpack.c.b16 %v913, %v905
  %930 = vmatprep.subr.bf16.mxu0 0
  %931 = vmatpush1.bf16.msra.mxu0 %v490
  %932 = vmatprep.subr.bf16.mxu0 0
  %933 = vmatpush1.bf16.msra.mxu0 %v491
  %934 = vmatprep.subr.bf16.mxu0 0
  %935 = vmatpush1.bf16.msra.mxu0 %v492
  %936 = vmatprep.subr.bf16.mxu0 0
  %937 = vmatpush1.bf16.msra.mxu0 %v493
  %938 = vmatprep.subr.bf16.mxu0 0
  %939 = vmatpush1.bf16.msra.mxu0 %v494
  %940 = vmatprep.subr.bf16.mxu0 0
  %941 = vmatpush1.bf16.msra.mxu0 %v495
  %942 = vmatprep.subr.bf16.mxu0 0
  %943 = vmatpush1.bf16.msra.mxu0 %v496
  %944 = vmatprep.subr.bf16.mxu0 0
  %945 = vmatpush1.bf16.msra.mxu0 %v497
  %946 = vmatprep.subr.bf16.mxu0 0
  %947 = vmatpush1.bf16.msra.mxu0 %v498
  %948 = vmatprep.subr.bf16.mxu0 0
  %949 = vmatpush1.bf16.msra.mxu0 %v499
  %950 = vmatprep.subr.bf16.mxu0 0
  %951 = vmatpush1.bf16.msra.mxu0 %v500
  %952 = vmatprep.subr.bf16.mxu0 0
  %953 = vmatpush1.bf16.msra.mxu0 %v501
  %954 = vmatprep.subr.bf16.mxu0 0
  %955 = vmatpush1.bf16.msra.mxu0 %v502
  %956 = vmatprep.subr.bf16.mxu0 0
  %957 = vmatpush1.bf16.msra.mxu0 %v503
  %958 = vmatprep.subr.bf16.mxu0 0
  %959 = vmatpush1.bf16.msra.mxu0 %v504
  %960 = vmatprep.subr.bf16.mxu0 0
  %961 = vmatpush1.bf16.msra.mxu0 %v505
  %962 = vmatprep.mubr.bf16.mxu0 %v915
  %963 = vmatmul.mubr.bf16.gmra.mrb[0].mxu0 %v914
  %v964 = vpop.f32.mrb[0].mxu0
  %v965 = vadd.f32 %v192, %v964
  %v966 = vpop.f32.mrb[0].mxu0
  %v967 = vpop.f32.mrb[0].mxu0
  %v968 = vadd.f32 %v192, %v967
  %v969 = vpop.f32.mrb[0].mxu0
  %970 = vdwg.mxu0
  %971 = vmatprep.subr.bf16.mxu0 0
  %972 = vmatpush1.bf16.msra.mxu0 %v506
  %973 = vmatprep.subr.bf16.mxu0 0
  %974 = vmatpush1.bf16.msra.mxu0 %v507
  %975 = vmatprep.subr.bf16.mxu0 0
  %976 = vmatpush1.bf16.msra.mxu0 %v508
  %977 = vmatprep.subr.bf16.mxu0 0
  %978 = vmatpush1.bf16.msra.mxu0 %v509
  %979 = vmatprep.subr.bf16.mxu0 0
  %980 = vmatpush1.bf16.msra.mxu0 %v510
  %981 = vmatprep.subr.bf16.mxu0 0
  %982 = vmatpush1.bf16.msra.mxu0 %v511
  %983 = vmatprep.subr.bf16.mxu0 0
  %984 = vmatpush1.bf16.msra.mxu0 %v512
  %985 = vmatprep.subr.bf16.mxu0 0
  %986 = vmatpush1.bf16.msra.mxu0 %v513
  %987 = vmatprep.subr.bf16.mxu0 0
  %988 = vmatpush1.bf16.msra.mxu0 %v514
  %989 = vmatprep.subr.bf16.mxu0 0
  %990 = vmatpush1.bf16.msra.mxu0 %v515
  %991 = vmatprep.subr.bf16.mxu0 0
  %992 = vmatpush1.bf16.msra.mxu0 %v516
  %993 = vmatprep.subr.bf16.mxu0 0
  %994 = vmatpush1.bf16.msra.mxu0 %v517
  %995 = vmatprep.subr.bf16.mxu0 0
  %996 = vmatpush1.bf16.msra.mxu0 %v518
  %997 = vmatprep.subr.bf16.mxu0 0
  %998 = vmatpush1.bf16.msra.mxu0 %v519
  %999 = vmatprep.subr.bf16.mxu0 0
  %1000 = vmatpush1.bf16.msra.mxu0 %v520
  %1001 = vmatprep.subr.bf16.mxu0 0
  %1002 = vmatpush1.bf16.msra.mxu0 %v521
  %1003 = vmatprep.mubr.bf16.mxu0 %v917
  %1004 = vmatmul.mubr.bf16.gmra.mrb[0].mxu0 %v916
  %v1005 = vpop.f32.mrb[0].mxu0
  %v1006 = vadd.f32 %v965, %v1005
  %v1007 = vpop.f32.mrb[0].mxu0
  %v1008 = vpop.f32.mrb[0].mxu0
  %v1009 = vadd.f32 %v968, %v1008
  %v1010 = vpop.f32.mrb[0].mxu0
  %1011 = vdwg.mxu0
  %1012 = vmatprep.subr.bf16.mxu0 0
  %1013 = vmatpush1.bf16.msra.mxu0 %v522
  %1014 = vmatprep.subr.bf16.mxu0 0
  %1015 = vmatpush1.bf16.msra.mxu0 %v523
  %1016 = vmatprep.subr.bf16.mxu0 0
  %1017 = vmatpush1.bf16.msra.mxu0 %v524
  %1018 = vmatprep.subr.bf16.mxu0 0
  %1019 = vmatpush1.bf16.msra.mxu0 %v525
  %1020 = vmatprep.subr.bf16.mxu0 0
  %1021 = vmatpush1.bf16.msra.mxu0 %v526
  %1022 = vmatprep.subr.bf16.mxu0 0
  %1023 = vmatpush1.bf16.msra.mxu0 %v527
  %1024 = vmatprep.subr.bf16.mxu0 0
  %1025 = vmatpush1.bf16.msra.mxu0 %v528
  %1026 = vmatprep.subr.bf16.mxu0 0
  %1027 = vmatpush1.bf16.msra.mxu0 %v529
  %1028 = vmatprep.subr.bf16.mxu0 0
  %1029 = vmatpush1.bf16.msra.mxu0 %v530
  %1030 = vmatprep.subr.bf16.mxu0 0
  %1031 = vmatpush1.bf16.msra.mxu0 %v531
  %1032 = vmatprep.subr.bf16.mxu0 0
  %1033 = vmatpush1.bf16.msra.mxu0 %v532
  %1034 = vmatprep.subr.bf16.mxu0 0
  %1035 = vmatpush1.bf16.msra.mxu0 %v533
  %1036 = vmatprep.subr.bf16.mxu0 0
  %1037 = vmatpush1.bf16.msra.mxu0 %v534
  %1038 = vmatprep.subr.bf16.mxu0 0
  %1039 = vmatpush1.bf16.msra.mxu0 %v535
  %1040 = vmatprep.subr.bf16.mxu0 0
  %1041 = vmatpush1.bf16.msra.mxu0 %v536
  %1042 = vmatprep.subr.bf16.mxu0 0
  %1043 = vmatpush1.bf16.msra.mxu0 %v537
  %1044 = vmatprep.mubr.bf16.mxu0 %v919
  %1045 = vmatmul.mubr.bf16.gmra.mrb[0].mxu0 %v918
  %v1046 = vpop.f32.mrb[0].mxu0
  %v1047 = vadd.f32 %v1006, %v1046
  %v1048 = vpop.f32.mrb[0].mxu0
  %v1049 = vpop.f32.mrb[0].mxu0
  %v1050 = vadd.f32 %v1009, %v1049
  %v1051 = vpop.f32.mrb[0].mxu0
  %1052 = vdwg.mxu0
  %1053 = vmatprep.subr.bf16.mxu0 0
  %1054 = vmatpush1.bf16.msra.mxu0 %v538
  %1055 = vmatprep.subr.bf16.mxu0 0
  %1056 = vmatpush1.bf16.msra.mxu0 %v539
  %1057 = vmatprep.subr.bf16.mxu0 0
  %1058 = vmatpush1.bf16.msra.mxu0 %v540
  %1059 = vmatprep.subr.bf16.mxu0 0
  %1060 = vmatpush1.bf16.msra.mxu0 %v541
  %1061 = vmatprep.subr.bf16.mxu0 0
  %1062 = vmatpush1.bf16.msra.mxu0 %v542
  %1063 = vmatprep.subr.bf16.mxu0 0
  %1064 = vmatpush1.bf16.msra.mxu0 %v543
  %1065 = vmatprep.subr.bf16.mxu0 0
  %1066 = vmatpush1.bf16.msra.mxu0 %v544
  %1067 = vmatprep.subr.bf16.mxu0 0
  %1068 = vmatpush1.bf16.msra.mxu0 %v545
  %1069 = vmatprep.subr.bf16.mxu0 0
  %1070 = vmatpush1.bf16.msra.mxu0 %v546
  %1071 = vmatprep.subr.bf16.mxu0 0
  %1072 = vmatpush1.bf16.msra.mxu0 %v547
  %1073 = vmatprep.subr.bf16.mxu0 0
  %1074 = vmatpush1.bf16.msra.mxu0 %v548
  %1075 = vmatprep.subr.bf16.mxu0 0
  %1076 = vmatpush1.bf16.msra.mxu0 %v549
  %1077 = vmatprep.subr.bf16.mxu0 0
  %1078 = vmatpush1.bf16.msra.mxu0 %v550
  %1079 = vmatprep.subr.bf16.mxu0 0
  %1080 = vmatpush1.bf16.msra.mxu0 %v551
  %1081 = vmatprep.subr.bf16.mxu0 0
  %1082 = vmatpush1.bf16.msra.mxu0 %v552
  %1083 = vmatprep.subr.bf16.mxu0 0
  %1084 = vmatpush1.bf16.msra.mxu0 %v553
  %1085 = vmatprep.mubr.bf16.mxu0 %v921
  %1086 = vmatmul.mubr.bf16.gmra.mrb[0].mxu0 %v920
  %v1087 = vpop.f32.mrb[0].mxu0
  %v1088 = vadd.f32 %v1047, %v1087
  %v1089 = vpop.f32.mrb[0].mxu0
  %v1090 = vpop.f32.mrb[0].mxu0
  %v1091 = vadd.f32 %v1050, %v1090
  %v1092 = vpop.f32.mrb[0].mxu0
  %1093 = vdwg.mxu0
  %v1094 = vmax.f32 %v1088, 0.0
  %v1095 = vmax.f32 %v1091, 0.0
  %v1096 = vpack.c.bf16 %v1095, %v1094
  %1097 = vmatprep.subr.bf16.mxu0 0
  %1098 = vmatpush1.bf16.msra.mxu0 %v823
  %1099 = vmatprep.subr.bf16.mxu0 0
  %1100 = vmatpush1.bf16.msra.mxu0 %v824
  %1101 = vmatprep.subr.bf16.mxu0 0
  %1102 = vmatpush1.bf16.msra.mxu0 %v825
  %1103 = vmatprep.subr.bf16.mxu0 0
  %1104 = vmatpush1.bf16.msra.mxu0 %v826
  %1105 = vmatprep.subr.bf16.mxu0 0
  %1106 = vmatpush1.bf16.msra.mxu0 %v827
  %1107 = vmatprep.subr.bf16.mxu0 0
  %1108 = vmatpush1.bf16.msra.mxu0 %v828
  %1109 = vmatprep.subr.bf16.mxu0 0
  %1110 = vmatpush1.bf16.msra.mxu0 %v829
  %1111 = vmatprep.subr.bf16.mxu0 0
  %1112 = vmatpush1.bf16.msra.mxu0 %v830
  %1113 = vmatprep.subr.bf16.mxu0 0
  %1114 = vmatpush1.bf16.msra.mxu0 0
  %1115 = vmatprep.subr.bf16.mxu0 0
  %1116 = vmatpush1.bf16.msra.mxu0 0
  %1117 = vmatprep.subr.bf16.mxu0 0
  %1118 = vmatpush1.bf16.msra.mxu0 0
  %1119 = vmatprep.subr.bf16.mxu0 0
  %1120 = vmatpush1.bf16.msra.mxu0 0
  %1121 = vmatprep.subr.bf16.mxu0 0
  %1122 = vmatpush1.bf16.msra.mxu0 0
  %1123 = vmatprep.subr.bf16.mxu0 0
  %1124 = vmatpush1.bf16.msra.mxu0 0
  %1125 = vmatprep.subr.bf16.mxu0 0
  %1126 = vmatpush1.bf16.msra.mxu0 0
  %1127 = vmatprep.subr.bf16.mxu0 0
  %1128 = vmatpush1.bf16.msra.mxu0 0
  %1129 = vmatprep.mubr.bf16.mxu0 0
  %1130 = vmatmul.mubr.bf16.gmra.mrb[0].mxu0 %v1096
  %v1131 = vpop.f32.mrb[0].mxu0
  %v1132 = vadd.f32 %v789, %v1131
  %v1133 = vpop.f32.mrb[0].mxu0
  %v1134 = vpop.f32.mrb[0].mxu0
  %v1135 = vadd.f32 %v789, %v1134
  %v1136 = vpop.f32.mrb[0].mxu0
  %1137 = vdwg.mxu0
  %1138 = vst [vmem:[%s9] sm:$0xff] %v1132
  %1139 = vst [vmem:[%s9 + $0x8] sm:$0xff] %v1135
  %v1140 = vld [vmem:[%s2] sm:$0xff]
  %v1141 = vld [vmem:[%s2 + $0x8] sm:$0xff]
  %v1142 = vld [vmem:[%s2 + $0x10] sm:$0xff]
  %v1143 = vld [vmem:[%s2 + $0x18] sm:$0xff]
  %v1144 = vld [vmem:[%s2 + $0x20] sm:$0xff]
  %v1145 = vld [vmem:[%s2 + $0x28] sm:$0xff]
  %v1146 = vld [vmem:[%s2 + $0x30] sm:$0xff]
  %v1147 = vld [vmem:[%s2 + $0x38] sm:$0xff]
  %v1156 = vunpack.c.l.b16 %v1140
  %v1157 = vunpack.c.h.b16 %v1140
  %v1158 = vunpack.c.l.b16 %v1141
  %v1159 = vunpack.c.h.b16 %v1141
  %v1160 = vunpack.c.l.b16 %v1142
  %v1161 = vunpack.c.h.b16 %v1142
  %v1162 = vunpack.c.l.b16 %v1143
  %v1163 = vunpack.c.h.b16 %v1143
  %v1164 = vunpack.c.l.b16 %v1144
  %v1165 = vunpack.c.h.b16 %v1144
  %v1166 = vunpack.c.l.b16 %v1145
  %v1167 = vunpack.c.h.b16 %v1145
  %v1168 = vunpack.c.l.b16 %v1146
  %v1169 = vunpack.c.h.b16 %v1146
  %v1170 = vunpack.c.l.b16 %v1147
  %v1171 = vunpack.c.h.b16 %v1147
  %v1172 = vpack.c.b16 %v1164, %v1156
  %v1173 = vpack.c.b16 %v1165, %v1157
  %v1174 = vpack.c.b16 %v1166, %v1158
  %v1175 = vpack.c.b16 %v1167, %v1159
  %v1176 = vpack.c.b16 %v1168, %v1160
  %v1177 = vpack.c.b16 %v1169, %v1161
  %v1178 = vpack.c.b16 %v1170, %v1162
  %v1179 = vpack.c.b16 %v1171, %v1163
  %1188 = vmatprep.subr.bf16.mxu0 0
  %1189 = vmatpush1.bf16.msra.mxu0 %v490
  %1190 = vmatprep.subr.bf16.mxu0 0
  %1191 = vmatpush1.bf16.msra.mxu0 %v491
  %1192 = vmatprep.subr.bf16.mxu0 0
  %1193 = vmatpush1.bf16.msra.mxu0 %v492
  %1194 = vmatprep.subr.bf16.mxu0 0
  %1195 = vmatpush1.bf16.msra.mxu0 %v493
  %1196 = vmatprep.subr.bf16.mxu0 0
  %1197 = vmatpush1.bf16.msra.mxu0 %v494
  %1198 = vmatprep.subr.bf16.mxu0 0
  %1199 = vmatpush1.bf16.msra.mxu0 %v495
  %1200 = vmatprep.subr.bf16.mxu0 0
  %1201 = vmatpush1.bf16.msra.mxu0 %v496
  %1202 = vmatprep.subr.bf16.mxu0 0
  %1203 = vmatpush1.bf16.msra.mxu0 %v497
  %1204 = vmatprep.subr.bf16.mxu0 0
  %1205 = vmatpush1.bf16.msra.mxu0 %v498
  %1206 = vmatprep.subr.bf16.mxu0 0
  %1207 = vmatpush1.bf16.msra.mxu0 %v499
  %1208 = vmatprep.subr.bf16.mxu0 0
  %1209 = vmatpush1.bf16.msra.mxu0 %v500
  %1210 = vmatprep.subr.bf16.mxu0 0
  %1211 = vmatpush1.bf16.msra.mxu0 %v501
  %1212 = vmatprep.subr.bf16.mxu0 0
  %1213 = vmatpush1.bf16.msra.mxu0 %v502
  %1214 = vmatprep.subr.bf16.mxu0 0
  %1215 = vmatpush1.bf16.msra.mxu0 %v503
  %1216 = vmatprep.subr.bf16.mxu0 0
  %1217 = vmatpush1.bf16.msra.mxu0 %v504
  %1218 = vmatprep.subr.bf16.mxu0 0
  %1219 = vmatpush1.bf16.msra.mxu0 %v505
  %1220 = vmatprep.mubr.bf16.mxu0 %v1173
  %1221 = vmatmul.mubr.bf16.gmra.mrb[0].mxu0 %v1172
  %v1222 = vpop.f32.mrb[0].mxu0
  %v1223 = vadd.f32 %v192, %v1222
  %v1224 = vpop.f32.mrb[0].mxu0
  %v1225 = vpop.f32.mrb[0].mxu0
  %v1226 = vadd.f32 %v192, %v1225
  %v1227 = vpop.f32.mrb[0].mxu0
  %1228 = vdwg.mxu0
  %1229 = vmatprep.subr.bf16.mxu0 0
  %1230 = vmatpush1.bf16.msra.mxu0 %v506
  %1231 = vmatprep.subr.bf16.mxu0 0
  %1232 = vmatpush1.bf16.msra.mxu0 %v507
  %1233 = vmatprep.subr.bf16.mxu0 0
  %1234 = vmatpush1.bf16.msra.mxu0 %v508
  %1235 = vmatprep.subr.bf16.mxu0 0
  %1236 = vmatpush1.bf16.msra.mxu0 %v509
  %1237 = vmatprep.subr.bf16.mxu0 0
  %1238 = vmatpush1.bf16.msra.mxu0 %v510
  %1239 = vmatprep.subr.bf16.mxu0 0
  %1240 = vmatpush1.bf16.msra.mxu0 %v511
  %1241 = vmatprep.subr.bf16.mxu0 0
  %1242 = vmatpush1.bf16.msra.mxu0 %v512
  %1243 = vmatprep.subr.bf16.mxu0 0
  %1244 = vmatpush1.bf16.msra.mxu0 %v513
  %1245 = vmatprep.subr.bf16.mxu0 0
  %1246 = vmatpush1.bf16.msra.mxu0 %v514
  %1247 = vmatprep.subr.bf16.mxu0 0
  %1248 = vmatpush1.bf16.msra.mxu0 %v515
  %1249 = vmatprep.subr.bf16.mxu0 0
  %1250 = vmatpush1.bf16.msra.mxu0 %v516
  %1251 = vmatprep.subr.bf16.mxu0 0
  %1252 = vmatpush1.bf16.msra.mxu0 %v517
  %1253 = vmatprep.subr.bf16.mxu0 0
  %1254 = vmatpush1.bf16.msra.mxu0 %v518
  %1255 = vmatprep.subr.bf16.mxu0 0
  %1256 = vmatpush1.bf16.msra.mxu0 %v519
  %1257 = vmatprep.subr.bf16.mxu0 0
  %1258 = vmatpush1.bf16.msra.mxu0 %v520
  %1259 = vmatprep.subr.bf16.mxu0 0
  %1260 = vmatpush1.bf16.msra.mxu0 %v521
  %1261 = vmatprep.mubr.bf16.mxu0 %v1175
  %1262 = vmatmul.mubr.bf16.gmra.mrb[0].mxu0 %v1174
  %v1263 = vpop.f32.mrb[0].mxu0
  %v1264 = vadd.f32 %v1223, %v1263
  %v1265 = vpop.f32.mrb[0].mxu0
  %v1266 = vpop.f32.mrb[0].mxu0
  %v1267 = vadd.f32 %v1226, %v1266
  %v1268 = vpop.f32.mrb[0].mxu0
  %1269 = vdwg.mxu0
  %1270 = vmatprep.subr.bf16.mxu0 0
  %1271 = vmatpush1.bf16.msra.mxu0 %v522
  %1272 = vmatprep.subr.bf16.mxu0 0
  %1273 = vmatpush1.bf16.msra.mxu0 %v523
  %1274 = vmatprep.subr.bf16.mxu0 0
  %1275 = vmatpush1.bf16.msra.mxu0 %v524
  %1276 = vmatprep.subr.bf16.mxu0 0
  %1277 = vmatpush1.bf16.msra.mxu0 %v525
  %1278 = vmatprep.subr.bf16.mxu0 0
  %1279 = vmatpush1.bf16.msra.mxu0 %v526
  %1280 = vmatprep.subr.bf16.mxu0 0
  %1281 = vmatpush1.bf16.msra.mxu0 %v527
  %1282 = vmatprep.subr.bf16.mxu0 0
  %1283 = vmatpush1.bf16.msra.mxu0 %v528
  %1284 = vmatprep.subr.bf16.mxu0 0
  %1285 = vmatpush1.bf16.msra.mxu0 %v529
  %1286 = vmatprep.subr.bf16.mxu0 0
  %1287 = vmatpush1.bf16.msra.mxu0 %v530
  %1288 = vmatprep.subr.bf16.mxu0 0
  %1289 = vmatpush1.bf16.msra.mxu0 %v531
  %1290 = vmatprep.subr.bf16.mxu0 0
  %1291 = vmatpush1.bf16.msra.mxu0 %v532
  %1292 = vmatprep.subr.bf16.mxu0 0
  %1293 = vmatpush1.bf16.msra.mxu0 %v533
  %1294 = vmatprep.subr.bf16.mxu0 0
  %1295 = vmatpush1.bf16.msra.mxu0 %v534
  %1296 = vmatprep.subr.bf16.mxu0 0
  %1297 = vmatpush1.bf16.msra.mxu0 %v535
  %1298 = vmatprep.subr.bf16.mxu0 0
  %1299 = vmatpush1.bf16.msra.mxu0 %v536
  %1300 = vmatprep.subr.bf16.mxu0 0
  %1301 = vmatpush1.bf16.msra.mxu0 %v537
  %1302 = vmatprep.mubr.bf16.mxu0 %v1177
  %1303 = vmatmul.mubr.bf16.gmra.mrb[0].mxu0 %v1176
  %v1304 = vpop.f32.mrb[0].mxu0
  %v1305 = vadd.f32 %v1264, %v1304
  %v1306 = vpop.f32.mrb[0].mxu0
  %v1307 = vpop.f32.mrb[0].mxu0
  %v1308 = vadd.f32 %v1267, %v1307
  %v1309 = vpop.f32.mrb[0].mxu0
  %1310 = vdwg.mxu0
  %1311 = vmatprep.subr.bf16.mxu0 0
  %1312 = vmatpush1.bf16.msra.mxu0 %v538
  %1313 = vmatprep.subr.bf16.mxu0 0
  %1314 = vmatpush1.bf16.msra.mxu0 %v539
  %1315 = vmatprep.subr.bf16.mxu0 0
  %1316 = vmatpush1.bf16.msra.mxu0 %v540
  %1317 = vmatprep.subr.bf16.mxu0 0
  %1318 = vmatpush1.bf16.msra.mxu0 %v541
  %1319 = vmatprep.subr.bf16.mxu0 0
  %1320 = vmatpush1.bf16.msra.mxu0 %v542
  %1321 = vmatprep.subr.bf16.mxu0 0
  %1322 = vmatpush1.bf16.msra.mxu0 %v543
  %1323 = vmatprep.subr.bf16.mxu0 0
  %1324 = vmatpush1.bf16.msra.mxu0 %v544
  %1325 = vmatprep.subr.bf16.mxu0 0
  %1326 = vmatpush1.bf16.msra.mxu0 %v545
  %1327 = vmatprep.subr.bf16.mxu0 0
  %1328 = vmatpush1.bf16.msra.mxu0 %v546
  %1329 = vmatprep.subr.bf16.mxu0 0
  %1330 = vmatpush1.bf16.msra.mxu0 %v547
  %1331 = vmatprep.subr.bf16.mxu0 0
  %1332 = vmatpush1.bf16.msra.mxu0 %v548
  %1333 = vmatprep.subr.bf16.mxu0 0
  %1334 = vmatpush1.bf16.msra.mxu0 %v549
  %1335 = vmatprep.subr.bf16.mxu0 0
  %1336 = vmatpush1.bf16.msra.mxu0 %v550
  %1337 = vmatprep.subr.bf16.mxu0 0
  %1338 = vmatpush1.bf16.msra.mxu0 %v551
  %1339 = vmatprep.subr.bf16.mxu0 0
  %1340 = vmatpush1.bf16.msra.mxu0 %v552
  %1341 = vmatprep.subr.bf16.mxu0 0
  %1342 = vmatpush1.bf16.msra.mxu0 %v553
  %1343 = vmatprep.mubr.bf16.mxu0 %v1179
  %1344 = vmatmul.mubr.bf16.gmra.mrb[0].mxu0 %v1178
  %v1345 = vpop.f32.mrb[0].mxu0
  %v1346 = vadd.f32 %v1305, %v1345
  %v1347 = vpop.f32.mrb[0].mxu0
  %v1348 = vpop.f32.mrb[0].mxu0
  %v1349 = vadd.f32 %v1308, %v1348
  %v1350 = vpop.f32.mrb[0].mxu0
  %1351 = vdwg.mxu0
  %v1352 = vmax.f32 %v1346, 0.0
  %v1353 = vmax.f32 %v1349, 0.0
  %v1354 = vpack.c.bf16 %v1353, %v1352
  %1355 = vmatprep.subr.bf16.mxu0 0
  %1356 = vmatpush1.bf16.msra.mxu0 %v823
  %1357 = vmatprep.subr.bf16.mxu0 0
  %1358 = vmatpush1.bf16.msra.mxu0 %v824
  %1359 = vmatprep.subr.bf16.mxu0 0
  %1360 = vmatpush1.bf16.msra.mxu0 %v825
  %1361 = vmatprep.subr.bf16.mxu0 0
  %1362 = vmatpush1.bf16.msra.mxu0 %v826
  %1363 = vmatprep.subr.bf16.mxu0 0
  %1364 = vmatpush1.bf16.msra.mxu0 %v827
  %1365 = vmatprep.subr.bf16.mxu0 0
  %1366 = vmatpush1.bf16.msra.mxu0 %v828
  %1367 = vmatprep.subr.bf16.mxu0 0
  %1368 = vmatpush1.bf16.msra.mxu0 %v829
  %1369 = vmatprep.subr.bf16.mxu0 0
  %1370 = vmatpush1.bf16.msra.mxu0 %v830
  %1371 = vmatprep.subr.bf16.mxu0 0
  %1372 = vmatpush1.bf16.msra.mxu0 0
  %1373 = vmatprep.subr.bf16.mxu0 0
  %1374 = vmatpush1.bf16.msra.mxu0 0
  %1375 = vmatprep.subr.bf16.mxu0 0
  %1376 = vmatpush1.bf16.msra.mxu0 0
  %1377 = vmatprep.subr.bf16.mxu0 0
  %1378 = vmatpush1.bf16.msra.mxu0 0
  %1379 = vmatprep.subr.bf16.mxu0 0
  %1380 = vmatpush1.bf16.msra.mxu0 0
  %1381 = vmatprep.subr.bf16.mxu0 0
  %1382 = vmatpush1.bf16.msra.mxu0 0
  %1383 = vmatprep.subr.bf16.mxu0 0
  %1384 = vmatpush1.bf16.msra.mxu0 0
  %1385 = vmatprep.subr.bf16.mxu0 0
  %1386 = vmatpush1.bf16.msra.mxu0 0
  %1387 = vmatprep.mubr.bf16.mxu0 0
  %1388 = vmatmul.mubr.bf16.gmra.mrb[0].mxu0 %v1354
  %v1389 = vpop.f32.mrb[0].mxu0
  %v1390 = vadd.f32 %v789, %v1389
  %v1391 = vpop.f32.mrb[0].mxu0
  %v1392 = vpop.f32.mrb[0].mxu0
  %v1393 = vadd.f32 %v789, %v1392
  %v1394 = vpop.f32.mrb[0].mxu0
  %1395 = vdwg.mxu0
  %1396 = vst [vmem:[%s10] sm:$0xff] %v1390
  %1397 = vst [vmem:[%s10 + $0x8] sm:$0xff] %v1393
  %v1398 = vld [vmem:[%s3] sm:$0xff]
  %v1399 = vld [vmem:[%s3 + $0x8] sm:$0xff]
  %v1400 = vld [vmem:[%s3 + $0x10] sm:$0xff]
  %v1401 = vld [vmem:[%s3 + $0x18] sm:$0xff]
  %v1402 = vld [vmem:[%s3 + $0x20] sm:$0xff]
  %v1403 = vld [vmem:[%s3 + $0x28] sm:$0xff]
  %v1404 = vld [vmem:[%s3 + $0x30] sm:$0xff]
  %v1405 = vld [vmem:[%s3 + $0x38] sm:$0xff]
  %v1414 = vunpack.c.l.b16 %v1398
  %v1415 = vunpack.c.h.b16 %v1398
  %v1416 = vunpack.c.l.b16 %v1399
  %v1417 = vunpack.c.h.b16 %v1399
  %v1418 = vunpack.c.l.b16 %v1400
  %v1419 = vunpack.c.h.b16 %v1400
  %v1420 = vunpack.c.l.b16 %v1401
  %v1421 = vunpack.c.h.b16 %v1401
  %v1422 = vunpack.c.l.b16 %v1402
  %v1423 = vunpack.c.h.b16 %v1402
  %v1424 = vunpack.c.l.b16 %v1403
  %v1425 = vunpack.c.h.b16 %v1403
  %v1426 = vunpack.c.l.b16 %v1404
  %v1427 = vunpack.c.h.b16 %v1404
  %v1428 = vunpack.c.l.b16 %v1405
  %v1429 = vunpack.c.h.b16 %v1405
  %v1430 = vpack.c.b16 %v1422, %v1414
  %v1431 = vpack.c.b16 %v1423, %v1415
  %v1432 = vpack.c.b16 %v1424, %v1416
  %v1433 = vpack.c.b16 %v1425, %v1417
  %v1434 = vpack.c.b16 %v1426, %v1418
  %v1435 = vpack.c.b16 %v1427, %v1419
  %v1436 = vpack.c.b16 %v1428, %v1420
  %v1437 = vpack.c.b16 %v1429, %v1421
  %1446 = vmatprep.subr.bf16.mxu0 0
  %1447 = vmatpush1.bf16.msra.mxu0 %v490
  %1448 = vmatprep.subr.bf16.mxu0 0
  %1449 = vmatpush1.bf16.msra.mxu0 %v491
  %1450 = vmatprep.subr.bf16.mxu0 0
  %1451 = vmatpush1.bf16.msra.mxu0 %v492
  %1452 = vmatprep.subr.bf16.mxu0 0
  %1453 = vmatpush1.bf16.msra.mxu0 %v493
  %1454 = vmatprep.subr.bf16.mxu0 0
  %1455 = vmatpush1.bf16.msra.mxu0 %v494
  %1456 = vmatprep.subr.bf16.mxu0 0
  %1457 = vmatpush1.bf16.msra.mxu0 %v495
  %1458 = vmatprep.subr.bf16.mxu0 0
  %1459 = vmatpush1.bf16.msra.mxu0 %v496
  %1460 = vmatprep.subr.bf16.mxu0 0
  %1461 = vmatpush1.bf16.msra.mxu0 %v497
  %1462 = vmatprep.subr.bf16.mxu0 0
  %1463 = vmatpush1.bf16.msra.mxu0 %v498
  %1464 = vmatprep.subr.bf16.mxu0 0
  %1465 = vmatpush1.bf16.msra.mxu0 %v499
  %1466 = vmatprep.subr.bf16.mxu0 0
  %1467 = vmatpush1.bf16.msra.mxu0 %v500
  %1468 = vmatprep.subr.bf16.mxu0 0
  %1469 = vmatpush1.bf16.msra.mxu0 %v501
  %1470 = vmatprep.subr.bf16.mxu0 0
  %1471 = vmatpush1.bf16.msra.mxu0 %v502
  %1472 = vmatprep.subr.bf16.mxu0 0
  %1473 = vmatpush1.bf16.msra.mxu0 %v503
  %1474 = vmatprep.subr.bf16.mxu0 0
  %1475 = vmatpush1.bf16.msra.mxu0 %v504
  %1476 = vmatprep.subr.bf16.mxu0 0
  %1477 = vmatpush1.bf16.msra.mxu0 %v505
  %1478 = vmatprep.mubr.bf16.mxu0 %v1431
  %1479 = vmatmul.mubr.bf16.gmra.mrb[0].mxu0 %v1430
  %v1480 = vpop.f32.mrb[0].mxu0
  %v1481 = vadd.f32 %v192, %v1480
  %v1482 = vpop.f32.mrb[0].mxu0
  %v1483 = vpop.f32.mrb[0].mxu0
  %v1484 = vadd.f32 %v192, %v1483
  %v1485 = vpop.f32.mrb[0].mxu0
  %1486 = vdwg.mxu0
  %1487 = vmatprep.subr.bf16.mxu0 0
  %1488 = vmatpush1.bf16.msra.mxu0 %v506
  %1489 = vmatprep.subr.bf16.mxu0 0
  %1490 = vmatpush1.bf16.msra.mxu0 %v507
  %1491 = vmatprep.subr.bf16.mxu0 0
  %1492 = vmatpush1.bf16.msra.mxu0 %v508
  %1493 = vmatprep.subr.bf16.mxu0 0
  %1494 = vmatpush1.bf16.msra.mxu0 %v509
  %1495 = vmatprep.subr.bf16.mxu0 0
  %1496 = vmatpush1.bf16.msra.mxu0 %v510
  %1497 = vmatprep.subr.bf16.mxu0 0
  %1498 = vmatpush1.bf16.msra.mxu0 %v511
  %1499 = vmatprep.subr.bf16.mxu0 0
  %1500 = vmatpush1.bf16.msra.mxu0 %v512
  %1501 = vmatprep.subr.bf16.mxu0 0
  %1502 = vmatpush1.bf16.msra.mxu0 %v513
  %1503 = vmatprep.subr.bf16.mxu0 0
  %1504 = vmatpush1.bf16.msra.mxu0 %v514
  %1505 = vmatprep.subr.bf16.mxu0 0
  %1506 = vmatpush1.bf16.msra.mxu0 %v515
  %1507 = vmatprep.subr.bf16.mxu0 0
  %1508 = vmatpush1.bf16.msra.mxu0 %v516
  %1509 = vmatprep.subr.bf16.mxu0 0
  %1510 = vmatpush1.bf16.msra.mxu0 %v517
  %1511 = vmatprep.subr.bf16.mxu0 0
  %1512 = vmatpush1.bf16.msra.mxu0 %v518
  %1513 = vmatprep.subr.bf16.mxu0 0
  %1514 = vmatpush1.bf16.msra.mxu0 %v519
  %1515 = vmatprep.subr.bf16.mxu0 0
  %1516 = vmatpush1.bf16.msra.mxu0 %v520
  %1517 = vmatprep.subr.bf16.mxu0 0
  %1518 = vmatpush1.bf16.msra.mxu0 %v521
  %1519 = vmatprep.mubr.bf16.mxu0 %v1433
  %1520 = vmatmul.mubr.bf16.gmra.mrb[0].mxu0 %v1432
  %v1521 = vpop.f32.mrb[0].mxu0
  %v1522 = vadd.f32 %v1481, %v1521
  %v1523 = vpop.f32.mrb[0].mxu0
  %v1524 = vpop.f32.mrb[0].mxu0
  %v1525 = vadd.f32 %v1484, %v1524
  %v1526 = vpop.f32.mrb[0].mxu0
  %1527 = vdwg.mxu0
  %1528 = vmatprep.subr.bf16.mxu0 0
  %1529 = vmatpush1.bf16.msra.mxu0 %v522
  %1530 = vmatprep.subr.bf16.mxu0 0
  %1531 = vmatpush1.bf16.msra.mxu0 %v523
  %1532 = vmatprep.subr.bf16.mxu0 0
  %1533 = vmatpush1.bf16.msra.mxu0 %v524
  %1534 = vmatprep.subr.bf16.mxu0 0
  %1535 = vmatpush1.bf16.msra.mxu0 %v525
  %1536 = vmatprep.subr.bf16.mxu0 0
  %1537 = vmatpush1.bf16.msra.mxu0 %v526
  %1538 = vmatprep.subr.bf16.mxu0 0
  %1539 = vmatpush1.bf16.msra.mxu0 %v527
  %1540 = vmatprep.subr.bf16.mxu0 0
  %1541 = vmatpush1.bf16.msra.mxu0 %v528
  %1542 = vmatprep.subr.bf16.mxu0 0
  %1543 = vmatpush1.bf16.msra.mxu0 %v529
  %1544 = vmatprep.subr.bf16.mxu0 0
  %1545 = vmatpush1.bf16.msra.mxu0 %v530
  %1546 = vmatprep.subr.bf16.mxu0 0
  %1547 = vmatpush1.bf16.msra.mxu0 %v531
  %1548 = vmatprep.subr.bf16.mxu0 0
  %1549 = vmatpush1.bf16.msra.mxu0 %v532
  %1550 = vmatprep.subr.bf16.mxu0 0
  %1551 = vmatpush1.bf16.msra.mxu0 %v533
  %1552 = vmatprep.subr.bf16.mxu0 0
  %1553 = vmatpush1.bf16.msra.mxu0 %v534
  %1554 = vmatprep.subr.bf16.mxu0 0
  %1555 = vmatpush1.bf16.msra.mxu0 %v535
  %1556 = vmatprep.subr.bf16.mxu0 0
  %1557 = vmatpush1.bf16.msra.mxu0 %v536
  %1558 = vmatprep.subr.bf16.mxu0 0
  %1559 = vmatpush1.bf16.msra.mxu0 %v537
  %1560 = vmatprep.mubr.bf16.mxu0 %v1435
  %1561 = vmatmul.mubr.bf16.gmra.mrb[0].mxu0 %v1434
  %v1562 = vpop.f32.mrb[0].mxu0
  %v1563 = vadd.f32 %v1522, %v1562
  %v1564 = vpop.f32.mrb[0].mxu0
  %v1565 = vpop.f32.mrb[0].mxu0
  %v1566 = vadd.f32 %v1525, %v1565
  %v1567 = vpop.f32.mrb[0].mxu0
  %1568 = vdwg.mxu0
  %1569 = vmatprep.subr.bf16.mxu0 0
  %1570 = vmatpush1.bf16.msra.mxu0 %v538
  %1571 = vmatprep.subr.bf16.mxu0 0
  %1572 = vmatpush1.bf16.msra.mxu0 %v539
  %1573 = vmatprep.subr.bf16.mxu0 0
  %1574 = vmatpush1.bf16.msra.mxu0 %v540
  %1575 = vmatprep.subr.bf16.mxu0 0
  %1576 = vmatpush1.bf16.msra.mxu0 %v541
  %1577 = vmatprep.subr.bf16.mxu0 0
  %1578 = vmatpush1.bf16.msra.mxu0 %v542
  %1579 = vmatprep.subr.bf16.mxu0 0
  %1580 = vmatpush1.bf16.msra.mxu0 %v543
  %1581 = vmatprep.subr.bf16.mxu0 0
  %1582 = vmatpush1.bf16.msra.mxu0 %v544
  %1583 = vmatprep.subr.bf16.mxu0 0
  %1584 = vmatpush1.bf16.msra.mxu0 %v545
  %1585 = vmatprep.subr.bf16.mxu0 0
  %1586 = vmatpush1.bf16.msra.mxu0 %v546
  %1587 = vmatprep.subr.bf16.mxu0 0
  %1588 = vmatpush1.bf16.msra.mxu0 %v547
  %1589 = vmatprep.subr.bf16.mxu0 0
  %1590 = vmatpush1.bf16.msra.mxu0 %v548
  %1591 = vmatprep.subr.bf16.mxu0 0
  %1592 = vmatpush1.bf16.msra.mxu0 %v549
  %1593 = vmatprep.subr.bf16.mxu0 0
  %1594 = vmatpush1.bf16.msra.mxu0 %v550
  %1595 = vmatprep.subr.bf16.mxu0 0
  %1596 = vmatpush1.bf16.msra.mxu0 %v551
  %1597 = vmatprep.subr.bf16.mxu0 0
  %1598 = vmatpush1.bf16.msra.mxu0 %v552
  %1599 = vmatprep.subr.bf16.mxu0 0
  %1600 = vmatpush1.bf16.msra.mxu0 %v553
  %1601 = vmatprep.mubr.bf16.mxu0 %v1437
  %1602 = vmatmul.mubr.bf16.gmra.mrb[0].mxu0 %v1436
  %v1603 = vpop.f32.mrb[0].mxu0
  %v1604 = vadd.f32 %v1563, %v1603
  %v1605 = vpop.f32.mrb[0].mxu0
  %v1606 = vpop.f32.mrb[0].mxu0
  %v1607 = vadd.f32 %v1566, %v1606
  %v1608 = vpop.f32.mrb[0].mxu0
  %1609 = vdwg.mxu0
  %v1610 = vmax.f32 %v1604, 0.0
  %v1611 = vmax.f32 %v1607, 0.0
  %v1612 = vpack.c.bf16 %v1611, %v1610
  %1613 = vmatprep.subr.bf16.mxu0 0
  %1614 = vmatpush1.bf16.msra.mxu0 %v823
  %1615 = vmatprep.subr.bf16.mxu0 0
  %1616 = vmatpush1.bf16.msra.mxu0 %v824
  %1617 = vmatprep.subr.bf16.mxu0 0
  %1618 = vmatpush1.bf16.msra.mxu0 %v825
  %1619 = vmatprep.subr.bf16.mxu0 0
  %1620 = vmatpush1.bf16.msra.mxu0 %v826
  %1621 = vmatprep.subr.bf16.mxu0 0
  %1622 = vmatpush1.bf16.msra.mxu0 %v827
  %1623 = vmatprep.subr.bf16.mxu0 0
  %1624 = vmatpush1.bf16.msra.mxu0 %v828
  %1625 = vmatprep.subr.bf16.mxu0 0
  %1626 = vmatpush1.bf16.msra.mxu0 %v829
  %1627 = vmatprep.subr.bf16.mxu0 0
  %1628 = vmatpush1.bf16.msra.mxu0 %v830
  %1629 = vmatprep.subr.bf16.mxu0 0
  %1630 = vmatpush1.bf16.msra.mxu0 0
  %1631 = vmatprep.subr.bf16.mxu0 0
  %1632 = vmatpush1.bf16.msra.mxu0 0
  %1633 = vmatprep.subr.bf16.mxu0 0
  %1634 = vmatpush1.bf16.msra.mxu0 0
  %1635 = vmatprep.subr.bf16.mxu0 0
  %1636 = vmatpush1.bf16.msra.mxu0 0
  %1637 = vmatprep.subr.bf16.mxu0 0
  %1638 = vmatpush1.bf16.msra.mxu0 0
  %1639 = vmatprep.subr.bf16.mxu0 0
  %1640 = vmatpush1.bf16.msra.mxu0 0
  %1641 = vmatprep.subr.bf16.mxu0 0
  %1642 = vmatpush1.bf16.msra.mxu0 0
  %1643 = vmatprep.subr.bf16.mxu0 0
  %1644 = vmatpush1.bf16.msra.mxu0 0
  %1645 = vmatprep.mubr.bf16.mxu0 0
  %1646 = vmatmul.mubr.bf16.gmra.mrb[0].mxu0 %v1612
  %v1647 = vpop.f32.mrb[0].mxu0
  %v1648 = vadd.f32 %v789, %v1647
  %v1649 = vpop.f32.mrb[0].mxu0
  %v1650 = vpop.f32.mrb[0].mxu0
  %v1651 = vadd.f32 %v789, %v1650
  %v1652 = vpop.f32.mrb[0].mxu0
  %1653 = vdwg.mxu0
  %1654 = vst [vmem:[%s11] sm:$0xff] %v1648
  %1655 = vst [vmem:[%s11 + $0x8] sm:$0xff] %v1651
  // Predicated region
  $region34: #{quadruplet_net_forward.1} parent=0 // pred_check
    _
  $region35: #{quadruplet_net_forward.1} parent=0 // pred_check_branch
    %1657 = sbr.rel (0) target = $region37
  $region36: #{quadruplet_net_forward.1} parent=0 // pred_region
    _
  $region37: #{quadruplet_net_forward.1} parent=0 // pred_fallthru
    _
  // Predicated region
  $region38: #{quadruplet_net_forward.1} parent=0 // pred_check
    _
  $region39: #{quadruplet_net_forward.1} parent=0 // pred_check_branch
    %1659 = sbr.rel (0) target = $region41
  $region40: #{quadruplet_net_forward.1} parent=0 // pred_region
    _
  $region41: #{quadruplet_net_forward.1} parent=0 // pred_fallthru
    _
  // Predicated region
  $region42: #{quadruplet_net_forward.1} parent=0 // pred_check
    _
  $region43: #{quadruplet_net_forward.1} parent=0 // pred_check_branch
    %1661 = sbr.rel (0) target = $region45
  $region44: #{quadruplet_net_forward.1} parent=0 // pred_region
    _
  $region45: #{quadruplet_net_forward.1} parent=0 // pred_fallthru
    _
  // Predicated region
  $region46: #{quadruplet_net_forward.1} parent=0 // pred_check
    _
  $region47: #{quadruplet_net_forward.1} parent=0 // pred_check_branch
    %1663 = sbr.rel (0) target = $region49
  $region48: #{quadruplet_net_forward.1} parent=0 // pred_region
    _
  $region49: #{quadruplet_net_forward.1} parent=0 // pred_fallthru
    _
  // Predicated region
  $region50: #{quadruplet_net_forward.1} parent=0 // pred_check
    _
  $region51: #{quadruplet_net_forward.1} parent=0 // pred_check_branch
    %1665 = sbr.rel (0) target = $region53
  $region52: #{quadruplet_net_forward.1} parent=0 // pred_region
    _
  $region53: #{quadruplet_net_forward.1} parent=0 // pred_fallthru
    _
  // Predicated region
  $region54: #{quadruplet_net_forward.1} parent=0 // pred_check
    _
  $region55: #{quadruplet_net_forward.1} parent=0 // pred_check_branch
    %1667 = sbr.rel (0) target = $region57
  $region56: #{quadruplet_net_forward.1} parent=0 // pred_region
    _
  $region57: #{quadruplet_net_forward.1} parent=0 // pred_fallthru
    _
  // Predicated region
  $region58: #{quadruplet_net_forward.1} parent=0 // pred_check
    _
  $region59: #{quadruplet_net_forward.1} parent=0 // pred_check_branch
    %1669 = sbr.rel (0) target = $region61
  $region60: #{quadruplet_net_forward.1} parent=0 // pred_region
    _
  $region61: #{quadruplet_net_forward.1} parent=0 // pred_fallthru
    _
  // Predicated region
  $region62: #{quadruplet_net_forward.1} parent=0 // pred_check
    _
  $region63: #{quadruplet_net_forward.1} parent=0 // pred_check_branch
    %1671 = sbr.rel (0) target = $region65
  $region64: #{quadruplet_net_forward.1} parent=0 // pred_region
    _
  $region65: #{quadruplet_net_forward.1} parent=0 // pred_fallthru
    _

</llo_original>
